<compile_context>
chip_gen: v5e
topology: v5e:2x2
jax: 0.10.0
libtpu: 0.0.40
codegen_flags: <defaults>
</compile_context>

<pallas_src>
import functools

import jax
import jax.numpy as jnp
from jax.experimental import pallas as pl
from jax.experimental.pallas import tpu as pltpu


def gru_chunk_kernel(gi_ref, h0_ref, w_hh_ref, b_hn_ref, w_fc_ref, b_fc_ref,
                     out_ref, hn_ref, h_scr,
                     *, chunk, hidden_size, out_size, matmul_dtype):
    """Runs `chunk` GRU timesteps for one batch chunk.

    gi_ref : (K, Bc, 3H) hoisted x_t @ W_ih + b_ih (+ folded b_hh r/z), time-major
    h0_ref : (Bc, H) f32 tanh(target[:, 0] @ output_to_hidden)
    w_hh   : (H, 3H) recurrent weight, gate columns r|z|n (torch.nn.GRU order)
    b_hn   : (1, H)  n-gate column of b_hh (must stay inside r*( . ))
    w_fc   : (H, O_pad), b_fc: (1, O_pad)
    out_ref: (K, Bc, O)  per-step fc output (time-major, un-padded lane width)
    hn_ref : (Bc, H) f32 VMEM-resident carry (also the final hidden state)
    h_scr  : (K, Bc, H) f32 scratch holding this chunk's hidden states
    """
    c = pl.program_id(1)  # time-chunk index (sequential "arbitrary" axis)

    @pl.when(c == 0)
    def _():
        hn_ref[...] = h0_ref[...]

    H = hidden_size
    h = hn_ref[...]                                   # (Bc, H) f32 carry
    w_hh = w_hh_ref[...]                              # resident across the grid
    b_hn = b_hn_ref[...].astype(jnp.float32)          # (1, H)

    # Statically-unrolled serial recurrence; only the current h stays in vregs,
    # each step's h goes to VMEM scratch via a single whole-tile store.
    for k in range(chunk):
        gi = gi_ref[k].astype(jnp.float32)            # (Bc, 3H)
        gh = jnp.dot(h.astype(matmul_dtype), w_hh,
                     preferred_element_type=jnp.float32)   # fused (Bc,H)@(H,3H)
        r = jax.nn.sigmoid(gi[:, :H] + gh[:, :H])
        z = jax.nn.sigmoid(gi[:, H:2 * H] + gh[:, H:2 * H])
        n = jnp.tanh(gi[:, 2 * H:] + r * (gh[:, 2 * H:] + b_hn))
        h = (1.0 - z) * n + z * h
        h_scr[k] = h

    hn_ref[...] = h                                    # write the carry once

    # Fused fc head: one (K*Bc, H) @ (H, O_pad) matmul per chunk.
    # TODO(synk): nn.Dropout(p=0.5) is identity in eval mode; no RNG applied.
    h_all = h_scr[...].reshape(-1, H)
    y = jnp.dot(h_all.astype(matmul_dtype), w_fc_ref[...],
                preferred_element_type=jnp.float32) + b_fc_ref[...]
    # Store only the real O columns (masked vst, but far less HBM writeback
    # than a 128-lane padded store when O is small).
    out_ref[...] = y[:, :out_size].reshape(out_ref.shape).astype(out_ref.dtype)


def gru_forward(x, target, params, *, time_chunk=8, batch_chunk=None,
                matmul_dtype=jnp.float32, single_buffer_weights=False):
    """x: (B, T, I), target: (B, T_t, O). Returns (out (B, T, O), hn (1, B, H)).

    matmul_dtype=jnp.bfloat16 streams gi / weights and feeds the MXU in bf16
    (peak on v5e/v6e/v7x) while keeping the carry and all gate math in f32.
    """
    B, T, I = x.shape
    H = params["w_hh"].shape[0]
    O = params["w_fc"].shape[1]
    O_pad = ((O + 127) // 128) * 128      # lane-padded fc width for the matmul

    # Whole batch per grid step fills the MXU M-dim; only split very large
    # batches in two (grid=(2, nc) shards across v7x's 2 TensorCores).
    if batch_chunk is None:
        batch_chunk = B // 2 if (B >= 256 and (B // 2) % 8 == 0) else B
    assert B % batch_chunk == 0 and batch_chunk % 8 == 0, \
        "B and batch_chunk must be multiples of 8 (sublane alignment)"
    nb = B // batch_chunk

    # Pad T up to a multiple of time_chunk instead of shrinking K (a prime T
    # would otherwise degrade to K=1 and pay the grid-step overhead per step).
    K = min(time_chunk, T)
    T_pad = pl.cdiv(T, K) * K
    nc = T_pad // K

    f32 = jnp.float32
    b_ih, b_hh = params["b_ih"], params["b_hh"]
    # Fold the r/z columns of b_hh into the hoisted input projection; the
    # n column must stay inside r*( . ) (torch.nn.GRU semantics).
    bias = jnp.concatenate([b_ih[:, :2 * H] + b_hh[:, :2 * H], b_ih[:, 2 * H:]], -1)
    b_hn = b_hh[:, 2 * H:]                                          # (1, H)

    # Hoisted input projection: one large parallel matmul, emitted time-major.
    gi = jnp.einsum("bti,ig->tbg", x.astype(f32), params["w_ih"],
                    precision="highest") + bias                     # (T, B, 3H)
    if T_pad != T:
        # Identity-step tail: a huge z pre-activation forces z == 1 exactly, so
        # h_new == h on padded steps (hn stays exact); padded output rows are
        # sliced off below.
        pad = jnp.zeros((T_pad - T, B, 3 * H), f32).at[:, :, H:2 * H].set(1e9)
        gi = jnp.concatenate([gi, pad], axis=0)
    gi = gi.astype(matmul_dtype)

    h0 = jnp.tanh(jnp.dot(target[:, 0, :].astype(f32), params["output_to_hidden"],
                          precision="highest"))                     # (B, H) f32

    w_hh = params["w_hh"].astype(matmul_dtype)
    w_fc = jnp.pad(params["w_fc"], ((0, 0), (0, O_pad - O))).astype(matmul_dtype)
    b_fc = jnp.pad(params["b_fc"], ((0, 0), (0, O_pad - O)))        # f32

    # Constant-index (resident) weight blocks; single-buffer them on v7x /
    # large H to halve their VMEM footprint (index never changes).
    w_mode = dict(pipeline_mode=pl.Buffered(1)) if single_buffer_weights else {}

    def w_spec(shape):
        return pl.BlockSpec(shape, lambda b, c: (0, 0), **w_mode)

    # Scoped-VMEM budget: double-buffered gi/out/h blocks + weights + scratch.
    mmb = jnp.dtype(matmul_dtype).itemsize
    est = (2 * (K * batch_chunk * 3 * H * mmb                       # gi blocks
                + K * batch_chunk * O * x.dtype.itemsize            # out blocks
                + 2 * batch_chunk * H * 4)                          # h0 + hn
           + (1 if single_buffer_weights else 2)
           * ((H * 3 * H + H * O_pad) * mmb + (H + O_pad) * 4)      # weights
           + K * batch_chunk * H * 4)                               # scratch
    vmem_limit = int(min(max(2 * est, 32 << 20), 64 << 20))

    kernel = functools.partial(gru_chunk_kernel, chunk=K, hidden_size=H,
                               out_size=O, matmul_dtype=matmul_dtype)

    # TODO(synk): only num_layers=1 (the module default) is implemented.
    out_tm, hn = pl.pallas_call(
        kernel,
        out_shape=(
            jax.ShapeDtypeStruct((T_pad, B, O), x.dtype),
            jax.ShapeDtypeStruct((B, H), jnp.float32),   # carry stays f32 always
        ),
        grid_spec=pltpu.PrefetchScalarGridSpec(
            num_scalar_prefetch=0,
            grid=(nb, nc),
            in_specs=[
                pl.BlockSpec((K, batch_chunk, 3 * H), lambda b, c: (c, b, 0)),  # gi
                pl.BlockSpec((batch_chunk, H), lambda b, c: (b, 0)),            # h0
                w_spec((H, 3 * H)),                                             # W_hh
                w_spec((1, H)),                                                 # b_hn
                w_spec((H, O_pad)),                                             # W_fc
                w_spec((1, O_pad)),                                             # b_fc
            ],
            out_specs=(
                pl.BlockSpec((K, batch_chunk, O), lambda b, c: (c, b, 0)),      # out
                pl.BlockSpec((batch_chunk, H), lambda b, c: (b, 0)),            # hn / carry
            ),
            scratch_shapes=[pltpu.VMEM((K, batch_chunk, H), jnp.float32)],
        ),
        compiler_params=pltpu.CompilerParams(
            dimension_semantics=("parallel", "arbitrary"),
            vmem_limit_bytes=vmem_limit),
    )(gi, h0, w_hh, b_hn, w_fc, b_fc)

    # O is narrow (un-padded), so this slice + swap is a tiny HBM pass
    # (~O / 3H of the gi traffic).
    out = jnp.swapaxes(out_tm[:T], 0, 1)
    return out, hn[None]                      # hn: (num_layers=1, B, H)


def gru_reference(x, target, params):
    """Pure-JAX reference of the same forward pass (for correctness check)."""
    H = params["w_hh"].shape[0]
    h = jnp.tanh(jnp.dot(target[:, 0, :], params["output_to_hidden"],
                         precision="highest"))

    def step(h, x_t):
        gi = jnp.dot(x_t, params["w_ih"], precision="highest") + params["b_ih"]
        gh = jnp.dot(h, params["w_hh"], precision="highest") + params["b_hh"]
        r = jax.nn.sigmoid(gi[:, :H] + gh[:, :H])
        z = jax.nn.sigmoid(gi[:, H:2 * H] + gh[:, H:2 * H])
        n = jnp.tanh(gi[:, 2 * H:] + r * gh[:, 2 * H:])
        h_new = (1.0 - z) * n + z * h
        y = jnp.dot(h_new, params["w_fc"], precision="highest") + params["b_fc"]
        return h_new, y

    h_final, ys = jax.lax.scan(step, h, jnp.transpose(x, (1, 0, 2)))
    return jnp.transpose(ys, (1, 0, 2)), h_final[None]


def make_params(key, input_size, hidden_size, output_size,
                init_weight_radius_scaling=1.0):
    """Deterministic parameter init mirroring the module's shapes.

    Weights are stored pre-fused / pre-transposed for x @ W layouts:
      w_ih (I, 3H), w_hh (H, 3H), gate column order (r | z | n) as in torch.nn.GRU.
    """
    ks = jax.random.split(key, 7)
    stdv_gru = 1.0 / (hidden_size ** 0.5)                       # torch.nn.GRU default
    stdv_hh = init_weight_radius_scaling / (hidden_size ** 0.5)
    stdv_fc = 1.0 / (hidden_size ** 0.5)                        # torch.nn.Linear default

    def u(k, shape, s):
        return jax.random.uniform(k, shape, jnp.float32, -s, s)

    return {
        "w_ih": u(ks[0], (input_size, 3 * hidden_size), stdv_gru),
        "w_hh": u(ks[1], (hidden_size, 3 * hidden_size), stdv_hh),
        "b_ih": u(ks[2], (1, 3 * hidden_size), stdv_gru),
        "b_hh": u(ks[3], (1, 3 * hidden_size), stdv_gru),
        # nn.Parameter(torch.Tensor(O, H)) is uninitialized in the module;
        # use a deterministic random init here.
        "output_to_hidden": u(ks[4], (output_size, hidden_size), stdv_gru),
        "w_fc": u(ks[5], (hidden_size, output_size), stdv_fc),   # (H, O) = W.T
        "b_fc": u(ks[6], (1, output_size), stdv_fc),
    }


if __name__ == "__main__":
    # Small but vreg-aligned shapes: B multiple of 8, H multiple of 128.
    B, T, I, H, O = 16, 16, 16, 128, 8

    key = jax.random.PRNGKey(0)
    k_x, k_t, k_p = jax.random.split(key, 3)
    x = jax.random.normal(k_x, (B, T, I), jnp.float32)
    target = jax.random.normal(k_t, (B, T, O), jnp.float32)
    params = make_params(k_p, I, H, O)

    out_ref, hn_ref = gru_reference(x, target, params)

    # f32 path: tight check against the pure-JAX reference.
    fwd = jax.jit(functools.partial(gru_forward, params=params, time_chunk=8))
    out, hn = fwd(x, target)
    jax.block_until_ready((out, hn))
    assert out.shape == (B, T, O) and hn.shape == (1, B, H)
    assert jnp.allclose(out, out_ref, atol=1e-4, rtol=1e-4)
    assert jnp.allclose(hn, hn_ref, atol=1e-4, rtol=1e-4)

    # Ragged T (exercises the exact identity-padded time tail; K stays at 8).
    T_odd = 13
    out_o, hn_o = jax.jit(functools.partial(gru_forward, params=params,
                                            time_chunk=8))(x[:, :T_odd], target)
    jax.block_until_ready((out_o, hn_o))
    out_or, hn_or = gru_reference(x[:, :T_odd], target, params)
    assert jnp.allclose(out_o, out_or, atol=1e-4, rtol=1e-4)
    assert jnp.allclose(hn_o, hn_or, atol=1e-4, rtol=1e-4)

    # bf16-matmul path (MXU-peak configuration on v5e/v6e/v7x): loose check.
    fwd_bf16 = jax.jit(functools.partial(gru_forward, params=params, time_chunk=8,
                                         matmul_dtype=jnp.bfloat16))
    out_b, hn_b = fwd_bf16(x, target)
    jax.block_until_ready((out_b, hn_b))
    assert jnp.allclose(out_b, out_ref, atol=1e-1, rtol=1e-1)

    print("KERNEL_OK")
</pallas_src>

<mosaic_0001>
module attributes {stable_mosaic.version = 11 : i64} {
  func.func @gru_chunk_kernel(%arg0: i32, %arg1: i32, %arg2: memref<8x16x384xf32, #tpu.memory_space<vmem>>, %arg3: memref<16x128xf32, #tpu.memory_space<vmem>>, %arg4: memref<128x384xf32, #tpu.memory_space<vmem>>, %arg5: memref<1x128xf32, #tpu.memory_space<vmem>>, %arg6: memref<128x128xf32, #tpu.memory_space<vmem>>, %arg7: memref<1x128xf32, #tpu.memory_space<vmem>>, %arg8: memref<8x16x8xf32, #tpu.memory_space<vmem>>, %arg9: memref<16x128xf32, #tpu.memory_space<vmem>>, %arg10: memref<8x16x128xf32, #tpu.memory_space<vmem>>) attributes {dimension_semantics = [#tpu.dimension_semantics<parallel>, #tpu.dimension_semantics<arbitrary>], iteration_bounds = array<i64: 1, 2>, scalar_prefetch = 0 : i64, scratch_operands = 1 : i64, tpu.core_type = #tpu.core_type<tc>, window_params = [{transform_indices = @transform_0, window_bounds = array<i64: 8, 16, 384>}, {transform_indices = @transform_1, window_bounds = array<i64: 16, 128>}, {pipeline_mode = #tpu.pipeline_mode<synchronous>, transform_indices = @transform_2, window_bounds = array<i64: 128, 384>}, {pipeline_mode = #tpu.pipeline_mode<synchronous>, transform_indices = @transform_3, window_bounds = array<i64: 1, 128>}, {pipeline_mode = #tpu.pipeline_mode<synchronous>, transform_indices = @transform_4, window_bounds = array<i64: 128, 128>}, {pipeline_mode = #tpu.pipeline_mode<synchronous>, transform_indices = @transform_5, window_bounds = array<i64: 1, 128>}, {transform_indices = @transform_6, window_bounds = array<i64: 8, 16, 8>}, {transform_indices = @transform_7, window_bounds = array<i64: 16, 128>}]} {
    %c0_i32 = arith.constant 0 : i32
    %0 = arith.cmpi eq, %arg1, %c0_i32 : i32
    %1 = arith.extui %0 : i1 to i32
    %c0_i32_0 = arith.constant 0 : i32
    %2 = arith.cmpi ne, %1, %c0_i32_0 : i32
    scf.if %2 {
      %c0_91 = arith.constant 0 : index
      %c0_92 = arith.constant 0 : index
      %289 = vector.load %arg3[%c0_91, %c0_92] : memref<16x128xf32, #tpu.memory_space<vmem>>, vector<16x128xf32>
      %c0_93 = arith.constant 0 : index
      %c0_94 = arith.constant 0 : index
      %290 = vector.load %arg9[%c0_93, %c0_94] : memref<16x128xf32, #tpu.memory_space<vmem>>, vector<16x128xf32>
      tpu.vector_store %arg9[%c0_93, %c0_94], %289 {strides = array<i32>} : memref<16x128xf32, #tpu.memory_space<vmem>>, vector<16x128xf32>,
    } else {
    }
    %c0 = arith.constant 0 : index
    %c0_1 = arith.constant 0 : index
    %3 = vector.load %arg9[%c0, %c0_1] : memref<16x128xf32, #tpu.memory_space<vmem>>, vector<16x128xf32>
    %c0_2 = arith.constant 0 : index
    %c0_3 = arith.constant 0 : index
    %4 = vector.load %arg4[%c0_2, %c0_3] : memref<128x384xf32, #tpu.memory_space<vmem>>, vector<128x384xf32>
    %c0_4 = arith.constant 0 : index
    %c0_5 = arith.constant 0 : index
    %5 = vector.load %arg5[%c0_4, %c0_5] : memref<1x128xf32, #tpu.memory_space<vmem>>, vector<1x128xf32>
    %c0_6 = arith.constant 0 : index
    %c0_7 = arith.constant 0 : index
    %c0_8 = arith.constant 0 : index
    %6 = vector.load %arg2[%c0_6, %c0_7, %c0_8] : memref<8x16x384xf32, #tpu.memory_space<vmem>>, vector<1x16x384xf32>
    %7 = vector.shape_cast %6 : vector<1x16x384xf32> to vector<16x384xf32>
    %cst = arith.constant dense<0.000000e+00> : vector<16x384xf32>
    %8 = tpu.matmul %3, %4, %cst {dimension_numbers = #tpu.dot_dimension_numbers<[1], [0], [0], [1], [0, 0, 1, 1], [], []>} : vector<16x128xf32>, vector<128x384xf32>, vector<16x384xf32> -> vector<16x384xf32>
    %9 = vector.extract_strided_slice %7 {offsets = [0, 0], sizes = [16, 128], strides = [1, 1]} : vector<16x384xf32> to vector<16x128xf32>
    %10 = vector.extract_strided_slice %8 {offsets = [0, 0], sizes = [16, 128], strides = [1, 1]} : vector<16x384xf32> to vector<16x128xf32>
    %11 = arith.addf %9, %10 : vector<16x128xf32>
    %12 = arith.negf %11 : vector<16x128xf32>
    %13 = math.exp %12 : vector<16x128xf32>
    %cst_9 = arith.constant 1.000000e+00 : f32
    %14 = vector.broadcast %cst_9 : f32 to vector<16x128xf32>
    %15 = arith.addf %14, %13 : vector<16x128xf32>
    %16 = arith.divf %14, %15 : vector<16x128xf32>
    %17 = vector.extract_strided_slice %7 {offsets = [0, 128], sizes = [16, 128], strides = [1, 1]} : vector<16x384xf32> to vector<16x128xf32>
    %18 = vector.extract_strided_slice %8 {offsets = [0, 128], sizes = [16, 128], strides = [1, 1]} : vector<16x384xf32> to vector<16x128xf32>
    %19 = arith.addf %17, %18 : vector<16x128xf32>
    %20 = arith.negf %19 : vector<16x128xf32>
    %21 = math.exp %20 : vector<16x128xf32>
    %cst_10 = arith.constant 1.000000e+00 : f32
    %22 = vector.broadcast %cst_10 : f32 to vector<16x128xf32>
    %23 = arith.addf %22, %21 : vector<16x128xf32>
    %24 = arith.divf %22, %23 : vector<16x128xf32>
    %25 = vector.extract_strided_slice %7 {offsets = [0, 256], sizes = [16, 128], strides = [1, 1]} : vector<16x384xf32> to vector<16x128xf32>
    %26 = vector.extract_strided_slice %8 {offsets = [0, 256], sizes = [16, 128], strides = [1, 1]} : vector<16x384xf32> to vector<16x128xf32>
    %27 = vector.broadcast %5 : vector<1x128xf32> to vector<16x128xf32>
    %28 = arith.addf %26, %27 : vector<16x128xf32>
    %29 = arith.mulf %16, %28 : vector<16x128xf32>
    %30 = arith.addf %25, %29 : vector<16x128xf32>
    %31 = math.tanh %30 : vector<16x128xf32>
    %cst_11 = arith.constant 1.000000e+00 : f32
    %32 = vector.broadcast %cst_11 : f32 to vector<16x128xf32>
    %33 = arith.subf %32, %24 : vector<16x128xf32>
    %34 = arith.mulf %33, %31 : vector<16x128xf32>
    %35 = arith.mulf %24, %3 : vector<16x128xf32>
    %36 = arith.addf %34, %35 : vector<16x128xf32>
    %c0_12 = arith.constant 0 : index
    %c0_13 = arith.constant 0 : index
    %c0_14 = arith.constant 0 : index
    %37 = vector.load %arg10[%c0_12, %c0_13, %c0_14] : memref<8x16x128xf32, #tpu.memory_space<vmem>>, vector<1x16x128xf32>
    %38 = vector.shape_cast %37 : vector<1x16x128xf32> to vector<16x128xf32>
    %39 = vector.shape_cast %36 : vector<16x128xf32> to vector<1x16x128xf32>
    tpu.vector_store %arg10[%c0_12, %c0_13, %c0_14], %39 {strides = array<i32>} : memref<8x16x128xf32, #tpu.memory_space<vmem>>, vector<1x16x128xf32>,
    %c1 = arith.constant 1 : index
    %c0_15 = arith.constant 0 : index
    %c0_16 = arith.constant 0 : index
    %40 = vector.load %arg2[%c1, %c0_15, %c0_16] : memref<8x16x384xf32, #tpu.memory_space<vmem>>, vector<1x16x384xf32>
    %41 = vector.shape_cast %40 : vector<1x16x384xf32> to vector<16x384xf32>
    %cst_17 = arith.constant dense<0.000000e+00> : vector<16x384xf32>
    %42 = tpu.matmul %36, %4, %cst_17 {dimension_numbers = #tpu.dot_dimension_numbers<[1], [0], [0], [1], [0, 0, 1, 1], [], []>} : vector<16x128xf32>, vector<128x384xf32>, vector<16x384xf32> -> vector<16x384xf32>
    %43 = vector.extract_strided_slice %41 {offsets = [0, 0], sizes = [16, 128], strides = [1, 1]} : vector<16x384xf32> to vector<16x128xf32>
    %44 = vector.extract_strided_slice %42 {offsets = [0, 0], sizes = [16, 128], strides = [1, 1]} : vector<16x384xf32> to vector<16x128xf32>
    %45 = arith.addf %43, %44 : vector<16x128xf32>
    %46 = arith.negf %45 : vector<16x128xf32>
    %47 = math.exp %46 : vector<16x128xf32>
    %cst_18 = arith.constant 1.000000e+00 : f32
    %48 = vector.broadcast %cst_18 : f32 to vector<16x128xf32>
    %49 = arith.addf %48, %47 : vector<16x128xf32>
    %50 = arith.divf %48, %49 : vector<16x128xf32>
    %51 = vector.extract_strided_slice %41 {offsets = [0, 128], sizes = [16, 128], strides = [1, 1]} : vector<16x384xf32> to vector<16x128xf32>
    %52 = vector.extract_strided_slice %42 {offsets = [0, 128], sizes = [16, 128], strides = [1, 1]} : vector<16x384xf32> to vector<16x128xf32>
    %53 = arith.addf %51, %52 : vector<16x128xf32>
    %54 = arith.negf %53 : vector<16x128xf32>
    %55 = math.exp %54 : vector<16x128xf32>
    %cst_19 = arith.constant 1.000000e+00 : f32
    %56 = vector.broadcast %cst_19 : f32 to vector<16x128xf32>
    %57 = arith.addf %56, %55 : vector<16x128xf32>
    %58 = arith.divf %56, %57 : vector<16x128xf32>
    %59 = vector.extract_strided_slice %41 {offsets = [0, 256], sizes = [16, 128], strides = [1, 1]} : vector<16x384xf32> to vector<16x128xf32>
    %60 = vector.extract_strided_slice %42 {offsets = [0, 256], sizes = [16, 128], strides = [1, 1]} : vector<16x384xf32> to vector<16x128xf32>
    %61 = vector.broadcast %5 : vector<1x128xf32> to vector<16x128xf32>
    %62 = arith.addf %60, %61 : vector<16x128xf32>
    %63 = arith.mulf %50, %62 : vector<16x128xf32>
    %64 = arith.addf %59, %63 : vector<16x128xf32>
    %65 = math.tanh %64 : vector<16x128xf32>
    %cst_20 = arith.constant 1.000000e+00 : f32
    %66 = vector.broadcast %cst_20 : f32 to vector<16x128xf32>
    %67 = arith.subf %66, %58 : vector<16x128xf32>
    %68 = arith.mulf %67, %65 : vector<16x128xf32>
    %69 = arith.mulf %58, %36 : vector<16x128xf32>
    %70 = arith.addf %68, %69 : vector<16x128xf32>
    %c1_21 = arith.constant 1 : index
    %c0_22 = arith.constant 0 : index
    %c0_23 = arith.constant 0 : index
    %71 = vector.load %arg10[%c1_21, %c0_22, %c0_23] : memref<8x16x128xf32, #tpu.memory_space<vmem>>, vector<1x16x128xf32>
    %72 = vector.shape_cast %71 : vector<1x16x128xf32> to vector<16x128xf32>
    %73 = vector.shape_cast %70 : vector<16x128xf32> to vector<1x16x128xf32>
    tpu.vector_store %arg10[%c1_21, %c0_22, %c0_23], %73 {strides = array<i32>} : memref<8x16x128xf32, #tpu.memory_space<vmem>>, vector<1x16x128xf32>,
    %c2 = arith.constant 2 : index
    %c0_24 = arith.constant 0 : index
    %c0_25 = arith.constant 0 : index
    %74 = vector.load %arg2[%c2, %c0_24, %c0_25] : memref<8x16x384xf32, #tpu.memory_space<vmem>>, vector<1x16x384xf32>
    %75 = vector.shape_cast %74 : vector<1x16x384xf32> to vector<16x384xf32>
    %cst_26 = arith.constant dense<0.000000e+00> : vector<16x384xf32>
    %76 = tpu.matmul %70, %4, %cst_26 {dimension_numbers = #tpu.dot_dimension_numbers<[1], [0], [0], [1], [0, 0, 1, 1], [], []>} : vector<16x128xf32>, vector<128x384xf32>, vector<16x384xf32> -> vector<16x384xf32>
    %77 = vector.extract_strided_slice %75 {offsets = [0, 0], sizes = [16, 128], strides = [1, 1]} : vector<16x384xf32> to vector<16x128xf32>
    %78 = vector.extract_strided_slice %76 {offsets = [0, 0], sizes = [16, 128], strides = [1, 1]} : vector<16x384xf32> to vector<16x128xf32>
    %79 = arith.addf %77, %78 : vector<16x128xf32>
    %80 = arith.negf %79 : vector<16x128xf32>
    %81 = math.exp %80 : vector<16x128xf32>
    %cst_27 = arith.constant 1.000000e+00 : f32
    %82 = vector.broadcast %cst_27 : f32 to vector<16x128xf32>
    %83 = arith.addf %82, %81 : vector<16x128xf32>
    %84 = arith.divf %82, %83 : vector<16x128xf32>
    %85 = vector.extract_strided_slice %75 {offsets = [0, 128], sizes = [16, 128], strides = [1, 1]} : vector<16x384xf32> to vector<16x128xf32>
    %86 = vector.extract_strided_slice %76 {offsets = [0, 128], sizes = [16, 128], strides = [1, 1]} : vector<16x384xf32> to vector<16x128xf32>
    %87 = arith.addf %85, %86 : vector<16x128xf32>
    %88 = arith.negf %87 : vector<16x128xf32>
    %89 = math.exp %88 : vector<16x128xf32>
    %cst_28 = arith.constant 1.000000e+00 : f32
    %90 = vector.broadcast %cst_28 : f32 to vector<16x128xf32>
    %91 = arith.addf %90, %89 : vector<16x128xf32>
    %92 = arith.divf %90, %91 : vector<16x128xf32>
    %93 = vector.extract_strided_slice %75 {offsets = [0, 256], sizes = [16, 128], strides = [1, 1]} : vector<16x384xf32> to vector<16x128xf32>
    %94 = vector.extract_strided_slice %76 {offsets = [0, 256], sizes = [16, 128], strides = [1, 1]} : vector<16x384xf32> to vector<16x128xf32>
    %95 = vector.broadcast %5 : vector<1x128xf32> to vector<16x128xf32>
    %96 = arith.addf %94, %95 : vector<16x128xf32>
    %97 = arith.mulf %84, %96 : vector<16x128xf32>
    %98 = arith.addf %93, %97 : vector<16x128xf32>
    %99 = math.tanh %98 : vector<16x128xf32>
    %cst_29 = arith.constant 1.000000e+00 : f32
    %100 = vector.broadcast %cst_29 : f32 to vector<16x128xf32>
    %101 = arith.subf %100, %92 : vector<16x128xf32>
    %102 = arith.mulf %101, %99 : vector<16x128xf32>
    %103 = arith.mulf %92, %70 : vector<16x128xf32>
    %104 = arith.addf %102, %103 : vector<16x128xf32>
    %c2_30 = arith.constant 2 : index
    %c0_31 = arith.constant 0 : index
    %c0_32 = arith.constant 0 : index
    %105 = vector.load %arg10[%c2_30, %c0_31, %c0_32] : memref<8x16x128xf32, #tpu.memory_space<vmem>>, vector<1x16x128xf32>
    %106 = vector.shape_cast %105 : vector<1x16x128xf32> to vector<16x128xf32>
    %107 = vector.shape_cast %104 : vector<16x128xf32> to vector<1x16x128xf32>
    tpu.vector_store %arg10[%c2_30, %c0_31, %c0_32], %107 {strides = array<i32>} : memref<8x16x128xf32, #tpu.memory_space<vmem>>, vector<1x16x128xf32>,
    %c3 = arith.constant 3 : index
    %c0_33 = arith.constant 0 : index
    %c0_34 = arith.constant 0 : index
    %108 = vector.load %arg2[%c3, %c0_33, %c0_34] : memref<8x16x384xf32, #tpu.memory_space<vmem>>, vector<1x16x384xf32>
    %109 = vector.shape_cast %108 : vector<1x16x384xf32> to vector<16x384xf32>
    %cst_35 = arith.constant dense<0.000000e+00> : vector<16x384xf32>
    %110 = tpu.matmul %104, %4, %cst_35 {dimension_numbers = #tpu.dot_dimension_numbers<[1], [0], [0], [1], [0, 0, 1, 1], [], []>} : vector<16x128xf32>, vector<128x384xf32>, vector<16x384xf32> -> vector<16x384xf32>
    %111 = vector.extract_strided_slice %109 {offsets = [0, 0], sizes = [16, 128], strides = [1, 1]} : vector<16x384xf32> to vector<16x128xf32>
    %112 = vector.extract_strided_slice %110 {offsets = [0, 0], sizes = [16, 128], strides = [1, 1]} : vector<16x384xf32> to vector<16x128xf32>
    %113 = arith.addf %111, %112 : vector<16x128xf32>
    %114 = arith.negf %113 : vector<16x128xf32>
    %115 = math.exp %114 : vector<16x128xf32>
    %cst_36 = arith.constant 1.000000e+00 : f32
    %116 = vector.broadcast %cst_36 : f32 to vector<16x128xf32>
    %117 = arith.addf %116, %115 : vector<16x128xf32>
    %118 = arith.divf %116, %117 : vector<16x128xf32>
    %119 = vector.extract_strided_slice %109 {offsets = [0, 128], sizes = [16, 128], strides = [1, 1]} : vector<16x384xf32> to vector<16x128xf32>
    %120 = vector.extract_strided_slice %110 {offsets = [0, 128], sizes = [16, 128], strides = [1, 1]} : vector<16x384xf32> to vector<16x128xf32>
    %121 = arith.addf %119, %120 : vector<16x128xf32>
    %122 = arith.negf %121 : vector<16x128xf32>
    %123 = math.exp %122 : vector<16x128xf32>
    %cst_37 = arith.constant 1.000000e+00 : f32
    %124 = vector.broadcast %cst_37 : f32 to vector<16x128xf32>
    %125 = arith.addf %124, %123 : vector<16x128xf32>
    %126 = arith.divf %124, %125 : vector<16x128xf32>
    %127 = vector.extract_strided_slice %109 {offsets = [0, 256], sizes = [16, 128], strides = [1, 1]} : vector<16x384xf32> to vector<16x128xf32>
    %128 = vector.extract_strided_slice %110 {offsets = [0, 256], sizes = [16, 128], strides = [1, 1]} : vector<16x384xf32> to vector<16x128xf32>
    %129 = vector.broadcast %5 : vector<1x128xf32> to vector<16x128xf32>
    %130 = arith.addf %128, %129 : vector<16x128xf32>
    %131 = arith.mulf %118, %130 : vector<16x128xf32>
    %132 = arith.addf %127, %131 : vector<16x128xf32>
    %133 = math.tanh %132 : vector<16x128xf32>
    %cst_38 = arith.constant 1.000000e+00 : f32
    %134 = vector.broadcast %cst_38 : f32 to vector<16x128xf32>
    %135 = arith.subf %134, %126 : vector<16x128xf32>
    %136 = arith.mulf %135, %133 : vector<16x128xf32>
    %137 = arith.mulf %126, %104 : vector<16x128xf32>
    %138 = arith.addf %136, %137 : vector<16x128xf32>
    %c3_39 = arith.constant 3 : index
    %c0_40 = arith.constant 0 : index
    %c0_41 = arith.constant 0 : index
    %139 = vector.load %arg10[%c3_39, %c0_40, %c0_41] : memref<8x16x128xf32, #tpu.memory_space<vmem>>, vector<1x16x128xf32>
    %140 = vector.shape_cast %139 : vector<1x16x128xf32> to vector<16x128xf32>
    %141 = vector.shape_cast %138 : vector<16x128xf32> to vector<1x16x128xf32>
    tpu.vector_store %arg10[%c3_39, %c0_40, %c0_41], %141 {strides = array<i32>} : memref<8x16x128xf32, #tpu.memory_space<vmem>>, vector<1x16x128xf32>,
    %c4 = arith.constant 4 : index
    %c0_42 = arith.constant 0 : index
    %c0_43 = arith.constant 0 : index
    %142 = vector.load %arg2[%c4, %c0_42, %c0_43] : memref<8x16x384xf32, #tpu.memory_space<vmem>>, vector<1x16x384xf32>
    %143 = vector.shape_cast %142 : vector<1x16x384xf32> to vector<16x384xf32>
    %cst_44 = arith.constant dense<0.000000e+00> : vector<16x384xf32>
    %144 = tpu.matmul %138, %4, %cst_44 {dimension_numbers = #tpu.dot_dimension_numbers<[1], [0], [0], [1], [0, 0, 1, 1], [], []>} : vector<16x128xf32>, vector<128x384xf32>, vector<16x384xf32> -> vector<16x384xf32>
    %145 = vector.extract_strided_slice %143 {offsets = [0, 0], sizes = [16, 128], strides = [1, 1]} : vector<16x384xf32> to vector<16x128xf32>
    %146 = vector.extract_strided_slice %144 {offsets = [0, 0], sizes = [16, 128], strides = [1, 1]} : vector<16x384xf32> to vector<16x128xf32>
    %147 = arith.addf %145, %146 : vector<16x128xf32>
    %148 = arith.negf %147 : vector<16x128xf32>
    %149 = math.exp %148 : vector<16x128xf32>
    %cst_45 = arith.constant 1.000000e+00 : f32
    %150 = vector.broadcast %cst_45 : f32 to vector<16x128xf32>
    %151 = arith.addf %150, %149 : vector<16x128xf32>
    %152 = arith.divf %150, %151 : vector<16x128xf32>
    %153 = vector.extract_strided_slice %143 {offsets = [0, 128], sizes = [16, 128], strides = [1, 1]} : vector<16x384xf32> to vector<16x128xf32>
    %154 = vector.extract_strided_slice %144 {offsets = [0, 128], sizes = [16, 128], strides = [1, 1]} : vector<16x384xf32> to vector<16x128xf32>
    %155 = arith.addf %153, %154 : vector<16x128xf32>
    %156 = arith.negf %155 : vector<16x128xf32>
    %157 = math.exp %156 : vector<16x128xf32>
    %cst_46 = arith.constant 1.000000e+00 : f32
    %158 = vector.broadcast %cst_46 : f32 to vector<16x128xf32>
    %159 = arith.addf %158, %157 : vector<16x128xf32>
    %160 = arith.divf %158, %159 : vector<16x128xf32>
    %161 = vector.extract_strided_slice %143 {offsets = [0, 256], sizes = [16, 128], strides = [1, 1]} : vector<16x384xf32> to vector<16x128xf32>
    %162 = vector.extract_strided_slice %144 {offsets = [0, 256], sizes = [16, 128], strides = [1, 1]} : vector<16x384xf32> to vector<16x128xf32>
    %163 = vector.broadcast %5 : vector<1x128xf32> to vector<16x128xf32>
    %164 = arith.addf %162, %163 : vector<16x128xf32>
    %165 = arith.mulf %152, %164 : vector<16x128xf32>
    %166 = arith.addf %161, %165 : vector<16x128xf32>
    %167 = math.tanh %166 : vector<16x128xf32>
    %cst_47 = arith.constant 1.000000e+00 : f32
    %168 = vector.broadcast %cst_47 : f32 to vector<16x128xf32>
    %169 = arith.subf %168, %160 : vector<16x128xf32>
    %170 = arith.mulf %169, %167 : vector<16x128xf32>
    %171 = arith.mulf %160, %138 : vector<16x128xf32>
    %172 = arith.addf %170, %171 : vector<16x128xf32>
    %c4_48 = arith.constant 4 : index
    %c0_49 = arith.constant 0 : index
    %c0_50 = arith.constant 0 : index
    %173 = vector.load %arg10[%c4_48, %c0_49, %c0_50] : memref<8x16x128xf32, #tpu.memory_space<vmem>>, vector<1x16x128xf32>
    %174 = vector.shape_cast %173 : vector<1x16x128xf32> to vector<16x128xf32>
    %175 = vector.shape_cast %172 : vector<16x128xf32> to vector<1x16x128xf32>
    tpu.vector_store %arg10[%c4_48, %c0_49, %c0_50], %175 {strides = array<i32>} : memref<8x16x128xf32, #tpu.memory_space<vmem>>, vector<1x16x128xf32>,
    %c5 = arith.constant 5 : index
    %c0_51 = arith.constant 0 : index
    %c0_52 = arith.constant 0 : index
    %176 = vector.load %arg2[%c5, %c0_51, %c0_52] : memref<8x16x384xf32, #tpu.memory_space<vmem>>, vector<1x16x384xf32>
    %177 = vector.shape_cast %176 : vector<1x16x384xf32> to vector<16x384xf32>
    %cst_53 = arith.constant dense<0.000000e+00> : vector<16x384xf32>
    %178 = tpu.matmul %172, %4, %cst_53 {dimension_numbers = #tpu.dot_dimension_numbers<[1], [0], [0], [1], [0, 0, 1, 1], [], []>} : vector<16x128xf32>, vector<128x384xf32>, vector<16x384xf32> -> vector<16x384xf32>
    %179 = vector.extract_strided_slice %177 {offsets = [0, 0], sizes = [16, 128], strides = [1, 1]} : vector<16x384xf32> to vector<16x128xf32>
    %180 = vector.extract_strided_slice %178 {offsets = [0, 0], sizes = [16, 128], strides = [1, 1]} : vector<16x384xf32> to vector<16x128xf32>
    %181 = arith.addf %179, %180 : vector<16x128xf32>
    %182 = arith.negf %181 : vector<16x128xf32>
    %183 = math.exp %182 : vector<16x128xf32>
    %cst_54 = arith.constant 1.000000e+00 : f32
    %184 = vector.broadcast %cst_54 : f32 to vector<16x128xf32>
    %185 = arith.addf %184, %183 : vector<16x128xf32>
    %186 = arith.divf %184, %185 : vector<16x128xf32>
    %187 = vector.extract_strided_slice %177 {offsets = [0, 128], sizes = [16, 128], strides = [1, 1]} : vector<16x384xf32> to vector<16x128xf32>
    %188 = vector.extract_strided_slice %178 {offsets = [0, 128], sizes = [16, 128], strides = [1, 1]} : vector<16x384xf32> to vector<16x128xf32>
    %189 = arith.addf %187, %188 : vector<16x128xf32>
    %190 = arith.negf %189 : vector<16x128xf32>
    %191 = math.exp %190 : vector<16x128xf32>
    %cst_55 = arith.constant 1.000000e+00 : f32
    %192 = vector.broadcast %cst_55 : f32 to vector<16x128xf32>
    %193 = arith.addf %192, %191 : vector<16x128xf32>
    %194 = arith.divf %192, %193 : vector<16x128xf32>
    %195 = vector.extract_strided_slice %177 {offsets = [0, 256], sizes = [16, 128], strides = [1, 1]} : vector<16x384xf32> to vector<16x128xf32>
    %196 = vector.extract_strided_slice %178 {offsets = [0, 256], sizes = [16, 128], strides = [1, 1]} : vector<16x384xf32> to vector<16x128xf32>
    %197 = vector.broadcast %5 : vector<1x128xf32> to vector<16x128xf32>
    %198 = arith.addf %196, %197 : vector<16x128xf32>
    %199 = arith.mulf %186, %198 : vector<16x128xf32>
    %200 = arith.addf %195, %199 : vector<16x128xf32>
    %201 = math.tanh %200 : vector<16x128xf32>
    %cst_56 = arith.constant 1.000000e+00 : f32
    %202 = vector.broadcast %cst_56 : f32 to vector<16x128xf32>
    %203 = arith.subf %202, %194 : vector<16x128xf32>
    %204 = arith.mulf %203, %201 : vector<16x128xf32>
    %205 = arith.mulf %194, %172 : vector<16x128xf32>
    %206 = arith.addf %204, %205 : vector<16x128xf32>
    %c5_57 = arith.constant 5 : index
    %c0_58 = arith.constant 0 : index
    %c0_59 = arith.constant 0 : index
    %207 = vector.load %arg10[%c5_57, %c0_58, %c0_59] : memref<8x16x128xf32, #tpu.memory_space<vmem>>, vector<1x16x128xf32>
    %208 = vector.shape_cast %207 : vector<1x16x128xf32> to vector<16x128xf32>
    %209 = vector.shape_cast %206 : vector<16x128xf32> to vector<1x16x128xf32>
    tpu.vector_store %arg10[%c5_57, %c0_58, %c0_59], %209 {strides = array<i32>} : memref<8x16x128xf32, #tpu.memory_space<vmem>>, vector<1x16x128xf32>,
    %c6 = arith.constant 6 : index
    %c0_60 = arith.constant 0 : index
    %c0_61 = arith.constant 0 : index
    %210 = vector.load %arg2[%c6, %c0_60, %c0_61] : memref<8x16x384xf32, #tpu.memory_space<vmem>>, vector<1x16x384xf32>
    %211 = vector.shape_cast %210 : vector<1x16x384xf32> to vector<16x384xf32>
    %cst_62 = arith.constant dense<0.000000e+00> : vector<16x384xf32>
    %212 = tpu.matmul %206, %4, %cst_62 {dimension_numbers = #tpu.dot_dimension_numbers<[1], [0], [0], [1], [0, 0, 1, 1], [], []>} : vector<16x128xf32>, vector<128x384xf32>, vector<16x384xf32> -> vector<16x384xf32>
    %213 = vector.extract_strided_slice %211 {offsets = [0, 0], sizes = [16, 128], strides = [1, 1]} : vector<16x384xf32> to vector<16x128xf32>
    %214 = vector.extract_strided_slice %212 {offsets = [0, 0], sizes = [16, 128], strides = [1, 1]} : vector<16x384xf32> to vector<16x128xf32>
    %215 = arith.addf %213, %214 : vector<16x128xf32>
    %216 = arith.negf %215 : vector<16x128xf32>
    %217 = math.exp %216 : vector<16x128xf32>
    %cst_63 = arith.constant 1.000000e+00 : f32
    %218 = vector.broadcast %cst_63 : f32 to vector<16x128xf32>
    %219 = arith.addf %218, %217 : vector<16x128xf32>
    %220 = arith.divf %218, %219 : vector<16x128xf32>
    %221 = vector.extract_strided_slice %211 {offsets = [0, 128], sizes = [16, 128], strides = [1, 1]} : vector<16x384xf32> to vector<16x128xf32>
    %222 = vector.extract_strided_slice %212 {offsets = [0, 128], sizes = [16, 128], strides = [1, 1]} : vector<16x384xf32> to vector<16x128xf32>
    %223 = arith.addf %221, %222 : vector<16x128xf32>
    %224 = arith.negf %223 : vector<16x128xf32>
    %225 = math.exp %224 : vector<16x128xf32>
    %cst_64 = arith.constant 1.000000e+00 : f32
    %226 = vector.broadcast %cst_64 : f32 to vector<16x128xf32>
    %227 = arith.addf %226, %225 : vector<16x128xf32>
    %228 = arith.divf %226, %227 : vector<16x128xf32>
    %229 = vector.extract_strided_slice %211 {offsets = [0, 256], sizes = [16, 128], strides = [1, 1]} : vector<16x384xf32> to vector<16x128xf32>
    %230 = vector.extract_strided_slice %212 {offsets = [0, 256], sizes = [16, 128], strides = [1, 1]} : vector<16x384xf32> to vector<16x128xf32>
    %231 = vector.broadcast %5 : vector<1x128xf32> to vector<16x128xf32>
    %232 = arith.addf %230, %231 : vector<16x128xf32>
    %233 = arith.mulf %220, %232 : vector<16x128xf32>
    %234 = arith.addf %229, %233 : vector<16x128xf32>
    %235 = math.tanh %234 : vector<16x128xf32>
    %cst_65 = arith.constant 1.000000e+00 : f32
    %236 = vector.broadcast %cst_65 : f32 to vector<16x128xf32>
    %237 = arith.subf %236, %228 : vector<16x128xf32>
    %238 = arith.mulf %237, %235 : vector<16x128xf32>
    %239 = arith.mulf %228, %206 : vector<16x128xf32>
    %240 = arith.addf %238, %239 : vector<16x128xf32>
    %c6_66 = arith.constant 6 : index
    %c0_67 = arith.constant 0 : index
    %c0_68 = arith.constant 0 : index
    %241 = vector.load %arg10[%c6_66, %c0_67, %c0_68] : memref<8x16x128xf32, #tpu.memory_space<vmem>>, vector<1x16x128xf32>
    %242 = vector.shape_cast %241 : vector<1x16x128xf32> to vector<16x128xf32>
    %243 = vector.shape_cast %240 : vector<16x128xf32> to vector<1x16x128xf32>
    tpu.vector_store %arg10[%c6_66, %c0_67, %c0_68], %243 {strides = array<i32>} : memref<8x16x128xf32, #tpu.memory_space<vmem>>, vector<1x16x128xf32>,
    %c7 = arith.constant 7 : index
    %c0_69 = arith.constant 0 : index
    %c0_70 = arith.constant 0 : index
    %244 = vector.load %arg2[%c7, %c0_69, %c0_70] : memref<8x16x384xf32, #tpu.memory_space<vmem>>, vector<1x16x384xf32>
    %245 = vector.shape_cast %244 : vector<1x16x384xf32> to vector<16x384xf32>
    %cst_71 = arith.constant dense<0.000000e+00> : vector<16x384xf32>
    %246 = tpu.matmul %240, %4, %cst_71 {dimension_numbers = #tpu.dot_dimension_numbers<[1], [0], [0], [1], [0, 0, 1, 1], [], []>} : vector<16x128xf32>, vector<128x384xf32>, vector<16x384xf32> -> vector<16x384xf32>
    %247 = vector.extract_strided_slice %245 {offsets = [0, 0], sizes = [16, 128], strides = [1, 1]} : vector<16x384xf32> to vector<16x128xf32>
    %248 = vector.extract_strided_slice %246 {offsets = [0, 0], sizes = [16, 128], strides = [1, 1]} : vector<16x384xf32> to vector<16x128xf32>
    %249 = arith.addf %247, %248 : vector<16x128xf32>
    %250 = arith.negf %249 : vector<16x128xf32>
    %251 = math.exp %250 : vector<16x128xf32>
    %cst_72 = arith.constant 1.000000e+00 : f32
    %252 = vector.broadcast %cst_72 : f32 to vector<16x128xf32>
    %253 = arith.addf %252, %251 : vector<16x128xf32>
    %254 = arith.divf %252, %253 : vector<16x128xf32>
    %255 = vector.extract_strided_slice %245 {offsets = [0, 128], sizes = [16, 128], strides = [1, 1]} : vector<16x384xf32> to vector<16x128xf32>
    %256 = vector.extract_strided_slice %246 {offsets = [0, 128], sizes = [16, 128], strides = [1, 1]} : vector<16x384xf32> to vector<16x128xf32>
    %257 = arith.addf %255, %256 : vector<16x128xf32>
    %258 = arith.negf %257 : vector<16x128xf32>
    %259 = math.exp %258 : vector<16x128xf32>
    %cst_73 = arith.constant 1.000000e+00 : f32
    %260 = vector.broadcast %cst_73 : f32 to vector<16x128xf32>
    %261 = arith.addf %260, %259 : vector<16x128xf32>
    %262 = arith.divf %260, %261 : vector<16x128xf32>
    %263 = vector.extract_strided_slice %245 {offsets = [0, 256], sizes = [16, 128], strides = [1, 1]} : vector<16x384xf32> to vector<16x128xf32>
    %264 = vector.extract_strided_slice %246 {offsets = [0, 256], sizes = [16, 128], strides = [1, 1]} : vector<16x384xf32> to vector<16x128xf32>
    %265 = vector.broadcast %5 : vector<1x128xf32> to vector<16x128xf32>
    %266 = arith.addf %264, %265 : vector<16x128xf32>
    %267 = arith.mulf %254, %266 : vector<16x128xf32>
    %268 = arith.addf %263, %267 : vector<16x128xf32>
    %269 = math.tanh %268 : vector<16x128xf32>
    %cst_74 = arith.constant 1.000000e+00 : f32
    %270 = vector.broadcast %cst_74 : f32 to vector<16x128xf32>
    %271 = arith.subf %270, %262 : vector<16x128xf32>
    %272 = arith.mulf %271, %269 : vector<16x128xf32>
    %273 = arith.mulf %262, %240 : vector<16x128xf32>
    %274 = arith.addf %272, %273 : vector<16x128xf32>
    %c7_75 = arith.constant 7 : index
    %c0_76 = arith.constant 0 : index
    %c0_77 = arith.constant 0 : index
    %275 = vector.load %arg10[%c7_75, %c0_76, %c0_77] : memref<8x16x128xf32, #tpu.memory_space<vmem>>, vector<1x16x128xf32>
    %276 = vector.shape_cast %275 : vector<1x16x128xf32> to vector<16x128xf32>
    %277 = vector.shape_cast %274 : vector<16x128xf32> to vector<1x16x128xf32>
    tpu.vector_store %arg10[%c7_75, %c0_76, %c0_77], %277 {strides = array<i32>} : memref<8x16x128xf32, #tpu.memory_space<vmem>>, vector<1x16x128xf32>,
    %c0_78 = arith.constant 0 : index
    %c0_79 = arith.constant 0 : index
    %278 = vector.load %arg9[%c0_78, %c0_79] : memref<16x128xf32, #tpu.memory_space<vmem>>, vector<16x128xf32>
    tpu.vector_store %arg9[%c0_78, %c0_79], %274 {strides = array<i32>} : memref<16x128xf32, #tpu.memory_space<vmem>>, vector<16x128xf32>,
    %c0_80 = arith.constant 0 : index
    %c0_81 = arith.constant 0 : index
    %c0_82 = arith.constant 0 : index
    %279 = vector.load %arg10[%c0_80, %c0_81, %c0_82] : memref<8x16x128xf32, #tpu.memory_space<vmem>>, vector<8x16x128xf32>
    %280 = vector.shape_cast %279 : vector<8x16x128xf32> to vector<128x128xf32>
    %c0_83 = arith.constant 0 : index
    %c0_84 = arith.constant 0 : index
    %281 = vector.load %arg6[%c0_83, %c0_84] : memref<128x128xf32, #tpu.memory_space<vmem>>, vector<128x128xf32>
    %cst_85 = arith.constant dense<0.000000e+00> : vector<128x128xf32>
    %282 = tpu.matmul %280, %281, %cst_85 {dimension_numbers = #tpu.dot_dimension_numbers<[1], [0], [0], [1], [0, 0, 1, 1], [], []>} : vector<128x128xf32>, vector<128x128xf32>, vector<128x128xf32> -> vector<128x128xf32>
    %c0_86 = arith.constant 0 : index
    %c0_87 = arith.constant 0 : index
    %283 = vector.load %arg7[%c0_86, %c0_87] : memref<1x128xf32, #tpu.memory_space<vmem>>, vector<1x128xf32>
    %284 = vector.broadcast %283 : vector<1x128xf32> to vector<128x128xf32>
    %285 = arith.addf %282, %284 : vector<128x128xf32>
    %286 = vector.extract_strided_slice %285 {offsets = [0, 0], sizes = [128, 8], strides = [1, 1]} : vector<128x128xf32> to vector<128x8xf32>
    %287 = vector.shape_cast %286 : vector<128x8xf32> to vector<8x16x8xf32>
    %c0_88 = arith.constant 0 : index
    %c0_89 = arith.constant 0 : index
    %c0_90 = arith.constant 0 : index
    %288 = vector.load %arg8[%c0_88, %c0_89, %c0_90] : memref<8x16x8xf32, #tpu.memory_space<vmem>>, vector<8x16x8xf32>
    tpu.vector_store %arg8[%c0_88, %c0_89, %c0_90], %287 {strides = array<i32>} : memref<8x16x8xf32, #tpu.memory_space<vmem>>, vector<8x16x8xf32>,
    return
  }
  func.func @transform_0(%arg0: i32, %arg1: i32) -> (i32, i32, i32) {
    %c0_i32 = arith.constant 0 : i32
    %c0_i32_0 = arith.constant 0 : i32
    return %arg1, %arg0, %c0_i32 : i32, i32, i32
  }
  func.func @transform_1(%arg0: i32, %arg1: i32) -> (i32, i32) {
    %c0_i32 = arith.constant 0 : i32
    %c0_i32_0 = arith.constant 0 : i32
    return %arg0, %c0_i32 : i32, i32
  }
  func.func @transform_2(%arg0: i32, %arg1: i32) -> (i32, i32) {
    %c0_i32 = arith.constant 0 : i32
    %c0_i32_0 = arith.constant 0 : i32
    %c0_i32_1 = arith.constant 0 : i32
    return %c0_i32, %c0_i32_0 : i32, i32
  }
  func.func @transform_3(%arg0: i32, %arg1: i32) -> (i32, i32) {
    %c0_i32 = arith.constant 0 : i32
    %c0_i32_0 = arith.constant 0 : i32
    %c0_i32_1 = arith.constant 0 : i32
    return %c0_i32, %c0_i32_0 : i32, i32
  }
  func.func @transform_4(%arg0: i32, %arg1: i32) -> (i32, i32) {
    %c0_i32 = arith.constant 0 : i32
    %c0_i32_0 = arith.constant 0 : i32
    %c0_i32_1 = arith.constant 0 : i32
    return %c0_i32, %c0_i32_0 : i32, i32
  }
  func.func @transform_5(%arg0: i32, %arg1: i32) -> (i32, i32) {
    %c0_i32 = arith.constant 0 : i32
    %c0_i32_0 = arith.constant 0 : i32
    %c0_i32_1 = arith.constant 0 : i32
    return %c0_i32, %c0_i32_0 : i32, i32
  }
  func.func @transform_6(%arg0: i32, %arg1: i32) -> (i32, i32, i32) {
    %c0_i32 = arith.constant 0 : i32
    %c0_i32_0 = arith.constant 0 : i32
    return %arg1, %arg0, %c0_i32 : i32, i32, i32
  }
  func.func @transform_7(%arg0: i32, %arg1: i32) -> (i32, i32) {
    %c0_i32 = arith.constant 0 : i32
    %c0_i32_0 = arith.constant 0 : i32
    return %arg0, %c0_i32 : i32, i32
  }
}

</mosaic_0001>

<llo_original>
// kernel: gru_forward.1
$region0: #{gru_forward.1}
  #allocation0 [shape = 'u32[]', space=smem, size = 0x4, offset = 0x4, fixed_abs, tag = 'smem constant byte address 0x4 - core index']
  #allocation1 [shape = 'u32[72,128]{1,0:T(1,128)}', space=vmem, size = 0x9000, scoped, tag = 'internal scratch']
  #allocation2 [shape = 'f32[8,16,128]{2,1,0:T(8,128)}', space=vmem, size = 0x10000, scoped, tag = 'scratch operand']
  %s0 = inlined_call_operand.vmem [shape: f32[16,16,384], index: 0, kind: input, shape index: {}]
  %s1 = inlined_call_operand.vmem [shape: f32[16,128], index: 1, kind: input, shape index: {}]
  %s2 = inlined_call_operand.vmem [shape: f32[128,384], index: 2, kind: input, shape index: {}]
  %s3 = inlined_call_operand.vmem [shape: f32[1,128], index: 3, kind: input, shape index: {}]
  %s4 = inlined_call_operand.vmem [shape: f32[128,128], index: 4, kind: input, shape index: {}]
  %s5 = inlined_call_operand.vmem [shape: f32[1,128], index: 5, kind: input, shape index: {}]
  %s6 = inlined_call_operand.vmem [shape: f32[16,16,8], index: 6, kind: output, shape index: {0}]
  %s7 = inlined_call_operand.hbm [shape: f32[16,128], index: 7, kind: output, shape index: {1}]
  %8 = xla_tuple %s6, %s7
  %s9 = sld [smem:[#allocation0]]
  $region69: #{gru_forward.1} parent=0
    _
  %s11 = ssub.s32 1, %s9
  %s12 = scalar_select 0, %s11, %s9
  $region1: #{gru_forward.1} parent=0
    #allocation3 [shape = 'u8[8192]{0}', space=vmem, size = 0x2000, scoped, tag = 'output window, operand 1, single buffered']
    #allocation4 [shape = 's32[2]{0}', space=sflag, size = 0x8, scoped, tag = 'scoped memory for gru_forward.1']
    %13 = vsyncpa [#allocation4], 0
    loop: start=0, step=1, limit=4
    $region2: #{gru_forward.1} parent=1 // loop_pre_header
      _
    $region3: #{gru_forward.1} parent=1 // loop_header
      %s15 = sphi 0, %s19
      %p16 = scmp.ge.s32.totalorder %s15, 4
      %s22 = sphi 0, %s34
      %s23 = sphi 0, %s30
      %s24 = sphi 0, %s22
      %s25 = sphi 0, %s23
      %s26 = sphi 0, %s24
      %s27 = sphi 0, %s25
      %s39 = sphi 0, %s41
      %s42 = sphi 0, %s39
      %s43 = sphi 0, %s42
      %s59 = sphi 0, %s43
      %s65 = sphi 0, %s67
      %s68 = sphi 0, %s65
      %s69 = sphi 0, %s68
      %s85 = sphi 0, %s69
      %s89 = sphi 0, %s89
      %s91 = sphi 0, %s89
      %s92 = sphi 0, %s91
      %s106 = sphi 0, %s92
      %s110 = sphi 0, %s110
      %s112 = sphi 0, %s110
      %s113 = sphi 0, %s112
      %s127 = sphi 0, %s113
      %s131 = sphi 0, %s131
      %s133 = sphi 0, %s131
      %s134 = sphi 0, %s133
      %s148 = sphi 0, %s134
      %s152 = sphi 0, %s152
      %s154 = sphi 0, %s152
      %s155 = sphi 0, %s154
      %s169 = sphi 0, %s155
      %s177 = sphi 0, %s179
      %s180 = sphi 0, %s177
      %s181 = sphi 0, %s180
      %s197 = sphi 0, %s181
      %s203 = sphi 0, %s205
      %s206 = sphi 0, %s203
      %s207 = sphi 0, %s206
      %s223 = sphi 0, %s207
    $region4: #{gru_forward.1} parent=1 // loop_header_branch
      %18 = sbr.rel (%p16) target = $region8
    $region5: #{gru_forward.1} parent=1 // loop_body
      %s20 = ssub.s32 %s15, 1
      %s21 = ssub.s32 %s15, 2
      %s28 = sadd.s32 1, %s23
      %p29 = scmp.ge.s32.totalorder %s28, 2
      %s30 = scalar_select %p29, 0, %s28
      %s31 = sadd.s32 1, %s22
      %s32 = scalar_select %p29, %s31, %s22
      %p33 = scmp.ge.s32.totalorder %s32, 1
      %s34 = scalar_select %p33, 0, %s32
      %s35 = ssub.s32 %s23, %s30
      %s36 = ssub.s32 %s22, %s34
      %s37 = sor.u32 %s35, %s36
      %p38 = scmp.eq.s32.totalorder %s37, 0
      %s40 = sadd.s32 %s39, 1
      %s41 = scalar_select %p38, %s39, %s40
      %p44 = pneg %p38
      %p45 = scmp.eq.s32.totalorder %s15, 1
      %p46 = por %p44, %p45
      %p47 = scmp.ne.s32.totalorder %s39, %s42
      %p48 = scmp.eq.s32.totalorder %s15, 0
      %p49 = por %p47, %p48
      %p50 = scmp.ne.s32.totalorder %s39, %s42
      %p51 = scmp.eq.s32.totalorder %s20, 1
      %p52 = por %p50, %p51
      %p53 = scmp.ne.s32.totalorder %s42, %s43
      %p54 = scmp.eq.s32.totalorder %s20, 0
      %p55 = por %p53, %p54
      %p56 = scmp.ne.s32.totalorder %s42, %s43
      %p57 = scmp.eq.s32.totalorder %s21, 1
      %p58 = por %p56, %p57
      %p60 = scmp.ne.s32.totalorder %s43, %s59
      %p61 = scmp.eq.s32.totalorder %s21, 0
      %p62 = por %p60, %p61
      %s63 = ssub.s32 %s22, %s34
      %p64 = scmp.eq.s32.totalorder %s63, 0
      %s66 = sadd.s32 %s65, 1
      %s67 = scalar_select %p64, %s65, %s66
      %p70 = pneg %p64
      %p71 = scmp.eq.s32.totalorder %s15, 1
      %p72 = por %p70, %p71
      %p73 = scmp.ne.s32.totalorder %s65, %s68
      %p74 = scmp.eq.s32.totalorder %s15, 0
      %p75 = por %p73, %p74
      %p76 = scmp.ne.s32.totalorder %s65, %s68
      %p77 = scmp.eq.s32.totalorder %s20, 1
      %p78 = por %p76, %p77
      %p79 = scmp.ne.s32.totalorder %s68, %s69
      %p80 = scmp.eq.s32.totalorder %s20, 0
      %p81 = por %p79, %p80
      %p82 = scmp.ne.s32.totalorder %s68, %s69
      %p83 = scmp.eq.s32.totalorder %s21, 1
      %p84 = por %p82, %p83
      %p86 = scmp.ne.s32.totalorder %s69, %s85
      %p87 = scmp.eq.s32.totalorder %s21, 0
      %p88 = por %p86, %p87
      %s90 = sadd.s32 %s89, 1
      %p93 = scmp.eq.s32.totalorder %s15, 1
      %p94 = scmp.ne.s32.totalorder %s89, %s91
      %p95 = scmp.eq.s32.totalorder %s15, 0
      %p96 = por %p94, %p95
      %p97 = scmp.ne.s32.totalorder %s89, %s91
      %p98 = scmp.eq.s32.totalorder %s20, 1
      %p99 = por %p97, %p98
      %p100 = scmp.ne.s32.totalorder %s91, %s92
      %p101 = scmp.eq.s32.totalorder %s20, 0
      %p102 = por %p100, %p101
      %p103 = scmp.ne.s32.totalorder %s91, %s92
      %p104 = scmp.eq.s32.totalorder %s21, 1
      %p105 = por %p103, %p104
      %p107 = scmp.ne.s32.totalorder %s92, %s106
      %p108 = scmp.eq.s32.totalorder %s21, 0
      %p109 = por %p107, %p108
      %s111 = sadd.s32 %s110, 1
      %p114 = scmp.eq.s32.totalorder %s15, 1
      %p115 = scmp.ne.s32.totalorder %s110, %s112
      %p116 = scmp.eq.s32.totalorder %s15, 0
      %p117 = por %p115, %p116
      %p118 = scmp.ne.s32.totalorder %s110, %s112
      %p119 = scmp.eq.s32.totalorder %s20, 1
      %p120 = por %p118, %p119
      %p121 = scmp.ne.s32.totalorder %s112, %s113
      %p122 = scmp.eq.s32.totalorder %s20, 0
      %p123 = por %p121, %p122
      %p124 = scmp.ne.s32.totalorder %s112, %s113
      %p125 = scmp.eq.s32.totalorder %s21, 1
      %p126 = por %p124, %p125
      %p128 = scmp.ne.s32.totalorder %s113, %s127
      %p129 = scmp.eq.s32.totalorder %s21, 0
      %p130 = por %p128, %p129
      %s132 = sadd.s32 %s131, 1
      %p135 = scmp.eq.s32.totalorder %s15, 1
      %p136 = scmp.ne.s32.totalorder %s131, %s133
      %p137 = scmp.eq.s32.totalorder %s15, 0
      %p138 = por %p136, %p137
      %p139 = scmp.ne.s32.totalorder %s131, %s133
      %p140 = scmp.eq.s32.totalorder %s20, 1
      %p141 = por %p139, %p140
      %p142 = scmp.ne.s32.totalorder %s133, %s134
      %p143 = scmp.eq.s32.totalorder %s20, 0
      %p144 = por %p142, %p143
      %p145 = scmp.ne.s32.totalorder %s133, %s134
      %p146 = scmp.eq.s32.totalorder %s21, 1
      %p147 = por %p145, %p146
      %p149 = scmp.ne.s32.totalorder %s134, %s148
      %p150 = scmp.eq.s32.totalorder %s21, 0
      %p151 = por %p149, %p150
      %s153 = sadd.s32 %s152, 1
      %p156 = scmp.eq.s32.totalorder %s15, 1
      %p157 = scmp.ne.s32.totalorder %s152, %s154
      %p158 = scmp.eq.s32.totalorder %s15, 0
      %p159 = por %p157, %p158
      %p160 = scmp.ne.s32.totalorder %s152, %s154
      %p161 = scmp.eq.s32.totalorder %s20, 1
      %p162 = por %p160, %p161
      %p163 = scmp.ne.s32.totalorder %s154, %s155
      %p164 = scmp.eq.s32.totalorder %s20, 0
      %p165 = por %p163, %p164
      %p166 = scmp.ne.s32.totalorder %s154, %s155
      %p167 = scmp.eq.s32.totalorder %s21, 1
      %p168 = por %p166, %p167
      %p170 = scmp.ne.s32.totalorder %s155, %s169
      %p171 = scmp.eq.s32.totalorder %s21, 0
      %p172 = por %p170, %p171
      %s173 = ssub.s32 %s23, %s30
      %s174 = ssub.s32 %s22, %s34
      %s175 = sor.u32 %s173, %s174
      %p176 = scmp.eq.s32.totalorder %s175, 0
      %s178 = sadd.s32 %s177, 1
      %s179 = scalar_select %p176, %s177, %s178
      %p182 = pneg %p176
      %p183 = scmp.eq.s32.totalorder %s15, 1
      %p184 = por %p182, %p183
      %p185 = scmp.ne.s32.totalorder %s177, %s180
      %p186 = scmp.eq.s32.totalorder %s15, 0
      %p187 = por %p185, %p186
      %p188 = scmp.ne.s32.totalorder %s177, %s180
      %p189 = scmp.eq.s32.totalorder %s20, 1
      %p190 = por %p188, %p189
      %p191 = scmp.ne.s32.totalorder %s180, %s181
      %p192 = scmp.eq.s32.totalorder %s20, 0
      %p193 = por %p191, %p192
      %p194 = scmp.ne.s32.totalorder %s180, %s181
      %p195 = scmp.eq.s32.totalorder %s21, 1
      %p196 = por %p194, %p195
      %p198 = scmp.ne.s32.totalorder %s181, %s197
      %p199 = scmp.eq.s32.totalorder %s21, 0
      %p200 = por %p198, %p199
      %s201 = ssub.s32 %s22, %s34
      %p202 = scmp.eq.s32.totalorder %s201, 0
      %s204 = sadd.s32 %s203, 1
      %s205 = scalar_select %p202, %s203, %s204
      %p208 = pneg %p202
      %p209 = scmp.eq.s32.totalorder %s15, 1
      %p210 = por %p208, %p209
      %p211 = scmp.ne.s32.totalorder %s203, %s206
      %p212 = scmp.eq.s32.totalorder %s15, 0
      %p213 = por %p211, %p212
      %p214 = scmp.ne.s32.totalorder %s203, %s206
      %p215 = scmp.eq.s32.totalorder %s20, 1
      %p216 = por %p214, %p215
      %p217 = scmp.ne.s32.totalorder %s206, %s207
      %p218 = scmp.eq.s32.totalorder %s20, 0
      %p219 = por %p217, %p218
      %p220 = scmp.ne.s32.totalorder %s206, %s207
      %p221 = scmp.eq.s32.totalorder %s21, 1
      %p222 = por %p220, %p221
      %p224 = scmp.ne.s32.totalorder %s207, %s223
      %p225 = scmp.eq.s32.totalorder %s21, 0
      %p226 = por %p224, %p225
      %p227 = scmp.le.s32.totalorder 1, %s15
      %p228 = scmp.lt.s32.totalorder %s15, 3
      %p229 = pnand %p227, %p228
      %p230 = pneg %p229
      // Predicated region
      $region9: #{gru_forward.1} parent=5 // pred_check
        _
      $region10: #{gru_forward.1} parent=5 // pred_check_branch
        %232 = sbr.rel (%p229) target = $region12
      $region11: #{gru_forward.1} parent=5 // pred_region
        %s233 = ssub.s32 %s15, 1
        // Predicated region
        $region13: #{gru_forward.1} parent=11 // pred_check
          %p234 = pneg %p81
        $region14: #{gru_forward.1} parent=11 // pred_check_branch
          %236 = sbr.rel (%p234) target = $region16
        $region15: #{gru_forward.1} parent=11 // pred_region
          %s237 = smul.u32 2, %s24
          %p238 = scmp.lt.s32.totalorder %s237, 1
          %s239 = scalar_select %p238, %s237, 1
          %s240 = smul.addr %s239, 8
          %s241 = scalar_lea.vmem %s1, %s240
          %s242 = smul.u32 2, %s24
        $region16: #{gru_forward.1} parent=11 // pred_fallthru
          _
        // Predicated region
        $region17: #{gru_forward.1} parent=11 // pred_check
          %p243 = pneg %p102
        $region18: #{gru_forward.1} parent=11 // pred_check_branch
          %245 = sbr.rel (%p243) target = $region20
        $region19: #{gru_forward.1} parent=11 // pred_region
          _
        $region20: #{gru_forward.1} parent=11 // pred_fallthru
          _
        // Predicated region
        $region21: #{gru_forward.1} parent=11 // pred_check
          %p246 = pneg %p123
        $region22: #{gru_forward.1} parent=11 // pred_check_branch
          %248 = sbr.rel (%p246) target = $region24
        $region23: #{gru_forward.1} parent=11 // pred_region
          _
        $region24: #{gru_forward.1} parent=11 // pred_fallthru
          _
        // Predicated region
        $region25: #{gru_forward.1} parent=11 // pred_check
          %p249 = pneg %p144
        $region26: #{gru_forward.1} parent=11 // pred_check_branch
          %251 = sbr.rel (%p249) target = $region28
        $region27: #{gru_forward.1} parent=11 // pred_region
          _
        $region28: #{gru_forward.1} parent=11 // pred_fallthru
          _
        // Predicated region
        $region29: #{gru_forward.1} parent=11 // pred_check
          %p252 = pneg %p165
        $region30: #{gru_forward.1} parent=11 // pred_check_branch
          %254 = sbr.rel (%p252) target = $region32
        $region31: #{gru_forward.1} parent=11 // pred_region
          _
        $region32: #{gru_forward.1} parent=11 // pred_fallthru
          _
      $region12: #{gru_forward.1} parent=5 // pred_fallthru
        _
      %p255 = scmp.lt.s32.totalorder %s15, 2
      // Predicated region
      $region33: #{gru_forward.1} parent=5 // pred_check
        %p256 = pneg %p255
      $region34: #{gru_forward.1} parent=5 // pred_check_branch
        %258 = sbr.rel (%p256) target = $region36
      $region35: #{gru_forward.1} parent=5 // pred_region
        // Predicated region
        $region37: #{gru_forward.1} parent=35 // pred_check
          %p259 = pneg %p49
        $region38: #{gru_forward.1} parent=35 // pred_check_branch
          %261 = sbr.rel (%p259) target = $region40
        $region39: #{gru_forward.1} parent=35 // pred_region
          %s262 = smul.u32 8, %s23
          %s263 = smul.u32 2, %s22
          %p264 = scmp.lt.s32.totalorder %s262, 15
          %s265 = scalar_select %p264, %s262, 15
          %p266 = scmp.lt.s32.totalorder %s263, 1
          %s267 = scalar_select %p266, %s263, 1
          %s268 = smul.addr %s267, 3
          %s269 = smul.addr %s265, 6
          %s270 = sadd.s32 %s268, %s269
          %s271 = smul.addr %s270, 8
          %s272 = scalar_lea.vmem %s0, %s271
          %s273 = smul.u32 8, %s23
          %s274 = smul.u32 2, %s22
        $region40: #{gru_forward.1} parent=35 // pred_fallthru
          _
      $region36: #{gru_forward.1} parent=5 // pred_fallthru
        _
      %p275 = scmp.le.s32.totalorder 1, %s15
      %p276 = scmp.lt.s32.totalorder %s15, 3
      %p277 = pnand %p275, %p276
      %p278 = pneg %p277
      // Predicated region
      $region41: #{gru_forward.1} parent=5 // pred_check
        _
      $region42: #{gru_forward.1} parent=5 // pred_check_branch
        %280 = sbr.rel (%p277) target = $region44
      $region43: #{gru_forward.1} parent=5 // pred_region
        %s281 = ssub.s32 %s15, 1
        %s282 = smul.u32 8, %s25
        %s283 = smul.u32 2, %s24
        %p284 = scmp.lt.s32.totalorder %s282, 15
        %s285 = scalar_select %p284, %s282, 15
        %p286 = scmp.lt.s32.totalorder %s283, 1
        %s287 = scalar_select %p286, %s283, 1
        %s288 = smul.addr %s287, 3
        %s289 = smul.addr %s285, 6
        %s290 = sadd.s32 %s288, %s289
        %s291 = smul.addr %s290, 8
        %s292 = scalar_lea.vmem %s0, %s291
        %p293 = pneg %p55
        %p294 = pneg %p52
        %s295 = smul.u32 2, %s24
        %p296 = scmp.lt.s32.totalorder %s295, 1
        %s297 = scalar_select %p296, %s295, 1
        %s298 = smul.addr %s297, 8
        %s299 = scalar_lea.vmem %s1, %s298
        %p300 = pneg %p81
        %p301 = pneg %p78
        %p302 = pneg %p102
        %p303 = pneg %p99
        %p304 = pneg %p123
        %p305 = pneg %p120
        %p306 = pneg %p144
        %p307 = pneg %p141
        %p308 = pneg %p165
        %p309 = pneg %p162
        %p310 = pneg %p193
        %p311 = pneg %p190
        %s312 = smul.u32 8, %s25
        %s313 = smul.u32 2, %s24
        %p314 = scmp.lt.s32.totalorder %s312, 15
        %s315 = scalar_select %p314, %s312, 15
        %p316 = scmp.lt.s32.totalorder %s313, 1
        %s317 = scalar_select %p316, %s313, 1
        %s318 = smul.addr %s315, 2
        %s319 = sadd.s32 %s317, %s318
        %s320 = smul.addr %s319, 8
        %s321 = scalar_lea.vmem %s6, %s320
        %p322 = pneg %p219
        %p323 = pneg %p216
        %s324 = smul.u32 8, %s25
        %s325 = smul.u32 2, %s24
        %p326 = scmp.lt.s32.totalorder %s324, 15
        %s327 = scalar_select %p326, %s324, 15
        %p328 = scmp.lt.s32.totalorder %s325, 1
        %s329 = scalar_select %p328, %s325, 1
        %s330 = smul.addr %s329, 3
        %s331 = smul.addr %s327, 6
        %s332 = sadd.s32 %s330, %s331
        %s333 = smul.addr %s332, 8
        %s334 = scalar_lea.vmem %s0, %s333
        %s335 = smul.u32 8, %s25
        %s336 = smul.u32 2, %s24
        %s337 = smul.u32 2, %s24
        %p338 = scmp.lt.s32.totalorder %s337, 1
        %s339 = scalar_select %p338, %s337, 1
        %s340 = smul.addr %s339, 8
        %s341 = scalar_lea.vmem %s1, %s340
        %s342 = smul.u32 2, %s24
        %s343 = smul.u32 8, %s25
        %s344 = smul.u32 2, %s24
        %p345 = scmp.lt.s32.totalorder %s343, 15
        %s346 = scalar_select %p345, %s343, 15
        %p347 = scmp.lt.s32.totalorder %s344, 1
        %s348 = scalar_select %p347, %s344, 1
        %s349 = smul.addr %s346, 2
        %s350 = sadd.s32 %s348, %s349
        %s351 = smul.addr %s350, 8
        %s352 = scalar_lea.vmem %s6, %s351
        %s353 = smul.u32 8, %s25
        %s354 = smul.u32 2, %s24
        %s355 = smul.u32 2, %s24
        %p356 = scmp.eq.s32.totalorder %s25, 0
        // Predicated region
        $region45: #{gru_forward.1} parent=43 // pred_check
          %p357 = pneg %p356
        $region46: #{gru_forward.1} parent=43 // pred_check_branch
          %359 = sbr.rel (%p357) target = $region48
        $region47: #{gru_forward.1} parent=43 // pred_region
          %v360 = vld [vmem:[%s341] sm:$0xff]
          %v361 = vld [vmem:[%s341 + $0x8] sm:$0xff]
          %362 = vst [vmem:[#allocation3] sm:$0xff] %v360
          %363 = vst [vmem:[#allocation3 + $0x8] sm:$0xff] %v361
        $region48: #{gru_forward.1} parent=43 // pred_fallthru
          _
        %v364 = vld [vmem:[#allocation3] sm:$0xff]
        %v365 = vld [vmem:[#allocation3 + $0x8] sm:$0xff]
        %v366 = vld [vmem:[%s2] sm:$0xff]
        %v367 = vld [vmem:[%s2 + $0x8] sm:$0xff]
        %v368 = vld [vmem:[%s2 + $0x10] sm:$0xff]
        %v369 = vld [vmem:[%s2 + $0x18] sm:$0xff]
        %v370 = vld [vmem:[%s2 + $0x20] sm:$0xff]
        %v371 = vld [vmem:[%s2 + $0x28] sm:$0xff]
        %v372 = vld [vmem:[%s2 + $0x30] sm:$0xff]
        %v373 = vld [vmem:[%s2 + $0x38] sm:$0xff]
        %v374 = vld [vmem:[%s2 + $0x40] sm:$0xff]
        %v375 = vld [vmem:[%s2 + $0x48] sm:$0xff]
        %v376 = vld [vmem:[%s2 + $0x50] sm:$0xff]
        %v377 = vld [vmem:[%s2 + $0x58] sm:$0xff]
        %v378 = vld [vmem:[%s2 + $0x60] sm:$0xff]
        %v379 = vld [vmem:[%s2 + $0x68] sm:$0xff]
        %v380 = vld [vmem:[%s2 + $0x70] sm:$0xff]
        %v381 = vld [vmem:[%s2 + $0x78] sm:$0xff]
        %v382 = vld [vmem:[%s2 + $0x80] sm:$0xff]
        %v383 = vld [vmem:[%s2 + $0x88] sm:$0xff]
        %v384 = vld [vmem:[%s2 + $0x90] sm:$0xff]
        %v385 = vld [vmem:[%s2 + $0x98] sm:$0xff]
        %v386 = vld [vmem:[%s2 + $0xa0] sm:$0xff]
        %v387 = vld [vmem:[%s2 + $0xa8] sm:$0xff]
        %v388 = vld [vmem:[%s2 + $0xb0] sm:$0xff]
        %v389 = vld [vmem:[%s2 + $0xb8] sm:$0xff]
        %v390 = vld [vmem:[%s2 + $0xc0] sm:$0xff]
        %v391 = vld [vmem:[%s2 + $0xc8] sm:$0xff]
        %v392 = vld [vmem:[%s2 + $0xd0] sm:$0xff]
        %v393 = vld [vmem:[%s2 + $0xd8] sm:$0xff]
        %v394 = vld [vmem:[%s2 + $0xe0] sm:$0xff]
        %v395 = vld [vmem:[%s2 + $0xe8] sm:$0xff]
        %v396 = vld [vmem:[%s2 + $0xf0] sm:$0xff]
        %v397 = vld [vmem:[%s2 + $0xf8] sm:$0xff]
        %v398 = vld [vmem:[%s2 + $0x100] sm:$0xff]
        %v399 = vld [vmem:[%s2 + $0x108] sm:$0xff]
        %v400 = vld [vmem:[%s2 + $0x110] sm:$0xff]
        %v401 = vld [vmem:[%s2 + $0x118] sm:$0xff]
        %v402 = vld [vmem:[%s2 + $0x120] sm:$0xff]
        %v403 = vld [vmem:[%s2 + $0x128] sm:$0xff]
        %v404 = vld [vmem:[%s2 + $0x130] sm:$0xff]
        %v405 = vld [vmem:[%s2 + $0x138] sm:$0xff]
        %v406 = vld [vmem:[%s2 + $0x140] sm:$0xff]
        %v407 = vld [vmem:[%s2 + $0x148] sm:$0xff]
        %v408 = vld [vmem:[%s2 + $0x150] sm:$0xff]
        %v409 = vld [vmem:[%s2 + $0x158] sm:$0xff]
        %v410 = vld [vmem:[%s2 + $0x160] sm:$0xff]
        %v411 = vld [vmem:[%s2 + $0x168] sm:$0xff]
        %v412 = vld [vmem:[%s2 + $0x170] sm:$0xff]
        %v413 = vld [vmem:[%s2 + $0x178] sm:$0xff]
        %v414 = vld [vmem:[%s3] sm:$0x1]
        %v415 = vld [vmem:[%s334] sm:$0xff]
        %v416 = vld [vmem:[%s334 + $0x8] sm:$0xff]
        %v417 = vld [vmem:[%s334 + $0x10] sm:$0xff]
        %v418 = vld [vmem:[%s334 + $0x18] sm:$0xff]
        %v419 = vld [vmem:[%s334 + $0x20] sm:$0xff]
        %v420 = vld [vmem:[%s334 + $0x28] sm:$0xff]
        %421 = vmatpush.msra.mxu0 %v411
        %422 = vmatpush.msra.mxu0 %v408
        %423 = vmatpush.msra.mxu0 %v405
        %424 = vmatpush.msra.mxu0 %v402
        %425 = vmatpush.msra.mxu0 %v399
        %426 = vmatpush.msra.mxu0 %v396
        %427 = vmatpush.msra.mxu0 %v393
        %428 = vmatpush.msra.mxu0 %v390
        %429 = vmatpush.msra.mxu0 %v387
        %430 = vmatpush.msra.mxu0 %v384
        %431 = vmatpush.msra.mxu0 %v381
        %432 = vmatpush.msra.mxu0 %v378
        %433 = vmatpush.msra.mxu0 %v375
        %434 = vmatpush.msra.mxu0 %v372
        %435 = vmatpush.msra.mxu0 %v369
        %436 = vmatpush.msra.mxu0 %v366
        %437 = vmatmul.f32.gmra.mxu0 %v364
        %v438 = vpop.f32.mrf.mxu0
        %v439 = vadd.f32 0.0, %v438
        %440 = vmatmul.f32.gmra.mxu0 %v365
        %v441 = vpop.f32.mrf.mxu0
        %v442 = vadd.f32 0.0, %v441
        %443 = vdwg.mxu0
        %444 = vmatpush.msra.mxu0 %v412
        %445 = vmatpush.msra.mxu0 %v409
        %446 = vmatpush.msra.mxu0 %v406
        %447 = vmatpush.msra.mxu0 %v403
        %448 = vmatpush.msra.mxu0 %v400
        %449 = vmatpush.msra.mxu0 %v397
        %450 = vmatpush.msra.mxu0 %v394
        %451 = vmatpush.msra.mxu0 %v391
        %452 = vmatpush.msra.mxu0 %v388
        %453 = vmatpush.msra.mxu0 %v385
        %454 = vmatpush.msra.mxu0 %v382
        %455 = vmatpush.msra.mxu0 %v379
        %456 = vmatpush.msra.mxu0 %v376
        %457 = vmatpush.msra.mxu0 %v373
        %458 = vmatpush.msra.mxu0 %v370
        %459 = vmatpush.msra.mxu0 %v367
        %460 = vmatmul.f32.gmra.mxu0 %v364
        %v461 = vpop.f32.mrf.mxu0
        %v462 = vadd.f32 0.0, %v461
        %463 = vmatmul.f32.gmra.mxu0 %v365
        %v464 = vpop.f32.mrf.mxu0
        %v465 = vadd.f32 0.0, %v464
        %466 = vdwg.mxu0
        %467 = vmatpush.msra.mxu0 %v413
        %468 = vmatpush.msra.mxu0 %v410
        %469 = vmatpush.msra.mxu0 %v407
        %470 = vmatpush.msra.mxu0 %v404
        %471 = vmatpush.msra.mxu0 %v401
        %472 = vmatpush.msra.mxu0 %v398
        %473 = vmatpush.msra.mxu0 %v395
        %474 = vmatpush.msra.mxu0 %v392
        %475 = vmatpush.msra.mxu0 %v389
        %476 = vmatpush.msra.mxu0 %v386
        %477 = vmatpush.msra.mxu0 %v383
        %478 = vmatpush.msra.mxu0 %v380
        %479 = vmatpush.msra.mxu0 %v377
        %480 = vmatpush.msra.mxu0 %v374
        %481 = vmatpush.msra.mxu0 %v371
        %482 = vmatpush.msra.mxu0 %v368
        %483 = vmatmul.f32.gmra.mxu0 %v364
        %v484 = vpop.f32.mrf.mxu0
        %v485 = vadd.f32 0.0, %v484
        %486 = vmatmul.f32.gmra.mxu0 %v365
        %v487 = vpop.f32.mrf.mxu0
        %v488 = vadd.f32 0.0, %v487
        %489 = vdwg.mxu0
        %v490 = vadd.f32 %v415, %v439
        %v491 = vadd.f32 %v418, %v442
        %v492 = vxor.u32 %v490, 2147483648
        %v493 = vxor.u32 %v491, 2147483648
        %v494 = vmul.f32 %v492, 1.442695
        %v495 = vpow.pop %v494
        %v496 = vmul.f32 %v493, 1.442695
        %v497 = vpow.pop %v496
        %v498 = vadd.f32 %v495, 1.0
        %v499 = vadd.f32 %v497, 1.0
        %v500 = vrcp.pop %v498
        %v501 = vmul.f32 %v498, %v500
        %v502 = vsub.f32 1.0, %v501
        %v503 = vmul.f32 %v500, %v502
        %v504 = vadd.f32 %v500, %v503
        %vm505 = vweird.f32 %v498
        %vm506 = vweird.f32 %v500
        %vm507 = vmor %vm505, %vm506
        %v508 = vsel %vm507, %v500, %v504
        %v509 = vand.u32 2147483647, %v498
        %vm510 = vcmp.eq.f32.partialorder %v509, 8.507059e+37
        %v511 = vand.u32 %v498, 2147483648
        %v512 = vor.u32 1.1754944e-38, %v511
        %v513 = vsel %vm510, %v512, %v508
        %v514 = vmul.f32 1.0, %v513
        %v515 = vrcp.pop %v499
        %v516 = vmul.f32 %v499, %v515
        %v517 = vsub.f32 1.0, %v516
        %v518 = vmul.f32 %v515, %v517
        %v519 = vadd.f32 %v515, %v518
        %vm520 = vweird.f32 %v499
        %vm521 = vweird.f32 %v515
        %vm522 = vmor %vm520, %vm521
        %v523 = vsel %vm522, %v515, %v519
        %v524 = vand.u32 2147483647, %v499
        %vm525 = vcmp.eq.f32.partialorder %v524, 8.507059e+37
        %v526 = vand.u32 %v499, 2147483648
        %v527 = vor.u32 1.1754944e-38, %v526
        %v528 = vsel %vm525, %v527, %v523
        %v529 = vmul.f32 1.0, %v528
        %v530 = vadd.f32 %v416, %v462
        %v531 = vadd.f32 %v419, %v465
        %v532 = vxor.u32 %v530, 2147483648
        %v533 = vxor.u32 %v531, 2147483648
        %v534 = vmul.f32 %v532, 1.442695
        %v535 = vpow.pop %v534
        %v536 = vmul.f32 %v533, 1.442695
        %v537 = vpow.pop %v536
        %v538 = vadd.f32 %v535, 1.0
        %v539 = vadd.f32 %v537, 1.0
        %v540 = vrcp.pop %v538
        %v541 = vmul.f32 %v538, %v540
        %v542 = vsub.f32 1.0, %v541
        %v543 = vmul.f32 %v540, %v542
        %v544 = vadd.f32 %v540, %v543
        %vm545 = vweird.f32 %v538
        %vm546 = vweird.f32 %v540
        %vm547 = vmor %vm545, %vm546
        %v548 = vsel %vm547, %v540, %v544
        %v549 = vand.u32 2147483647, %v538
        %vm550 = vcmp.eq.f32.partialorder %v549, 8.507059e+37
        %v551 = vand.u32 %v538, 2147483648
        %v552 = vor.u32 1.1754944e-38, %v551
        %v553 = vsel %vm550, %v552, %v548
        %v554 = vmul.f32 1.0, %v553
        %v555 = vrcp.pop %v539
        %v556 = vmul.f32 %v539, %v555
        %v557 = vsub.f32 1.0, %v556
        %v558 = vmul.f32 %v555, %v557
        %v559 = vadd.f32 %v555, %v558
        %vm560 = vweird.f32 %v539
        %vm561 = vweird.f32 %v555
        %vm562 = vmor %vm560, %vm561
        %v563 = vsel %vm562, %v555, %v559
        %v564 = vand.u32 2147483647, %v539
        %vm565 = vcmp.eq.f32.partialorder %v564, 8.507059e+37
        %v566 = vand.u32 %v539, 2147483648
        %v567 = vor.u32 1.1754944e-38, %v566
        %v568 = vsel %vm565, %v567, %v563
        %v569 = vmul.f32 1.0, %v568
        %v571 = vperm.slane %v414, 0
        %v573 = vadd.f32 %v485, %v571
        %v574 = vadd.f32 %v488, %v571
        %v575 = vmul.f32 %v514, %v573
        %v576 = vmul.f32 %v529, %v574
        %v577 = vadd.f32 %v417, %v575
        %v578 = vadd.f32 %v420, %v576
        %v579 = vtanh.pop %v577
        %v580 = vtanh.pop %v578
        %v581 = vsub.f32 1.0, %v554
        %v582 = vsub.f32 1.0, %v569
        %v583 = vmul.f32 %v581, %v579
        %v584 = vmul.f32 %v582, %v580
        %v585 = vmul.f32 %v554, %v364
        %v586 = vmul.f32 %v569, %v365
        %v587 = vadd.f32 %v583, %v585
        %v588 = vadd.f32 %v584, %v586
        %589 = vst [vmem:[#allocation2] sm:$0xff] %v587
        %590 = vst [vmem:[#allocation2 + $0x8] sm:$0xff] %v588
        %s591 = scalar_lea.vmem %s334, 48
        %v592 = vld [vmem:[%s591] sm:$0xff]
        %v593 = vld [vmem:[%s591 + $0x8] sm:$0xff]
        %v594 = vld [vmem:[%s591 + $0x10] sm:$0xff]
        %v595 = vld [vmem:[%s591 + $0x18] sm:$0xff]
        %v596 = vld [vmem:[%s591 + $0x20] sm:$0xff]
        %v597 = vld [vmem:[%s591 + $0x28] sm:$0xff]
        %598 = vmatpush.msra.mxu0 %v411
        %599 = vmatpush.msra.mxu0 %v408
        %600 = vmatpush.msra.mxu0 %v405
        %601 = vmatpush.msra.mxu0 %v402
        %602 = vmatpush.msra.mxu0 %v399
        %603 = vmatpush.msra.mxu0 %v396
        %604 = vmatpush.msra.mxu0 %v393
        %605 = vmatpush.msra.mxu0 %v390
        %606 = vmatpush.msra.mxu0 %v387
        %607 = vmatpush.msra.mxu0 %v384
        %608 = vmatpush.msra.mxu0 %v381
        %609 = vmatpush.msra.mxu0 %v378
        %610 = vmatpush.msra.mxu0 %v375
        %611 = vmatpush.msra.mxu0 %v372
        %612 = vmatpush.msra.mxu0 %v369
        %613 = vmatpush.msra.mxu0 %v366
        %614 = vmatmul.f32.gmra.mxu0 %v587
        %v615 = vpop.f32.mrf.mxu0
        %v616 = vadd.f32 0.0, %v615
        %617 = vmatmul.f32.gmra.mxu0 %v588
        %v618 = vpop.f32.mrf.mxu0
        %v619 = vadd.f32 0.0, %v618
        %620 = vdwg.mxu0
        %621 = vmatpush.msra.mxu0 %v412
        %622 = vmatpush.msra.mxu0 %v409
        %623 = vmatpush.msra.mxu0 %v406
        %624 = vmatpush.msra.mxu0 %v403
        %625 = vmatpush.msra.mxu0 %v400
        %626 = vmatpush.msra.mxu0 %v397
        %627 = vmatpush.msra.mxu0 %v394
        %628 = vmatpush.msra.mxu0 %v391
        %629 = vmatpush.msra.mxu0 %v388
        %630 = vmatpush.msra.mxu0 %v385
        %631 = vmatpush.msra.mxu0 %v382
        %632 = vmatpush.msra.mxu0 %v379
        %633 = vmatpush.msra.mxu0 %v376
        %634 = vmatpush.msra.mxu0 %v373
        %635 = vmatpush.msra.mxu0 %v370
        %636 = vmatpush.msra.mxu0 %v367
        %637 = vmatmul.f32.gmra.mxu0 %v587
        %v638 = vpop.f32.mrf.mxu0
        %v639 = vadd.f32 0.0, %v638
        %640 = vmatmul.f32.gmra.mxu0 %v588
        %v641 = vpop.f32.mrf.mxu0
        %v642 = vadd.f32 0.0, %v641
        %643 = vdwg.mxu0
        %644 = vmatpush.msra.mxu0 %v413
        %645 = vmatpush.msra.mxu0 %v410
        %646 = vmatpush.msra.mxu0 %v407
        %647 = vmatpush.msra.mxu0 %v404
        %648 = vmatpush.msra.mxu0 %v401
        %649 = vmatpush.msra.mxu0 %v398
        %650 = vmatpush.msra.mxu0 %v395
        %651 = vmatpush.msra.mxu0 %v392
        %652 = vmatpush.msra.mxu0 %v389
        %653 = vmatpush.msra.mxu0 %v386
        %654 = vmatpush.msra.mxu0 %v383
        %655 = vmatpush.msra.mxu0 %v380
        %656 = vmatpush.msra.mxu0 %v377
        %657 = vmatpush.msra.mxu0 %v374
        %658 = vmatpush.msra.mxu0 %v371
        %659 = vmatpush.msra.mxu0 %v368
        %660 = vmatmul.f32.gmra.mxu0 %v587
        %v661 = vpop.f32.mrf.mxu0
        %v662 = vadd.f32 0.0, %v661
        %663 = vmatmul.f32.gmra.mxu0 %v588
        %v664 = vpop.f32.mrf.mxu0
        %v665 = vadd.f32 0.0, %v664
        %666 = vdwg.mxu0
        %v667 = vadd.f32 %v592, %v616
        %v668 = vadd.f32 %v595, %v619
        %v669 = vxor.u32 %v667, 2147483648
        %v670 = vxor.u32 %v668, 2147483648
        %v671 = vmul.f32 %v669, 1.442695
        %v672 = vpow.pop %v671
        %v673 = vmul.f32 %v670, 1.442695
        %v674 = vpow.pop %v673
        %v675 = vadd.f32 %v672, 1.0
        %v676 = vadd.f32 %v674, 1.0
        %v677 = vrcp.pop %v675
        %v678 = vmul.f32 %v675, %v677
        %v679 = vsub.f32 1.0, %v678
        %v680 = vmul.f32 %v677, %v679
        %v681 = vadd.f32 %v677, %v680
        %vm682 = vweird.f32 %v675
        %vm683 = vweird.f32 %v677
        %vm684 = vmor %vm682, %vm683
        %v685 = vsel %vm684, %v677, %v681
        %v686 = vand.u32 2147483647, %v675
        %vm687 = vcmp.eq.f32.partialorder %v686, 8.507059e+37
        %v688 = vand.u32 %v675, 2147483648
        %v689 = vor.u32 1.1754944e-38, %v688
        %v690 = vsel %vm687, %v689, %v685
        %v691 = vmul.f32 1.0, %v690
        %v692 = vrcp.pop %v676
        %v693 = vmul.f32 %v676, %v692
        %v694 = vsub.f32 1.0, %v693
        %v695 = vmul.f32 %v692, %v694
        %v696 = vadd.f32 %v692, %v695
        %vm697 = vweird.f32 %v676
        %vm698 = vweird.f32 %v692
        %vm699 = vmor %vm697, %vm698
        %v700 = vsel %vm699, %v692, %v696
        %v701 = vand.u32 2147483647, %v676
        %vm702 = vcmp.eq.f32.partialorder %v701, 8.507059e+37
        %v703 = vand.u32 %v676, 2147483648
        %v704 = vor.u32 1.1754944e-38, %v703
        %v705 = vsel %vm702, %v704, %v700
        %v706 = vmul.f32 1.0, %v705
        %v707 = vadd.f32 %v593, %v639
        %v708 = vadd.f32 %v596, %v642
        %v709 = vxor.u32 %v707, 2147483648
        %v710 = vxor.u32 %v708, 2147483648
        %v711 = vmul.f32 %v709, 1.442695
        %v712 = vpow.pop %v711
        %v713 = vmul.f32 %v710, 1.442695
        %v714 = vpow.pop %v713
        %v715 = vadd.f32 %v712, 1.0
        %v716 = vadd.f32 %v714, 1.0
        %v717 = vrcp.pop %v715
        %v718 = vmul.f32 %v715, %v717
        %v719 = vsub.f32 1.0, %v718
        %v720 = vmul.f32 %v717, %v719
        %v721 = vadd.f32 %v717, %v720
        %vm722 = vweird.f32 %v715
        %vm723 = vweird.f32 %v717
        %vm724 = vmor %vm722, %vm723
        %v725 = vsel %vm724, %v717, %v721
        %v726 = vand.u32 2147483647, %v715
        %vm727 = vcmp.eq.f32.partialorder %v726, 8.507059e+37
        %v728 = vand.u32 %v715, 2147483648
        %v729 = vor.u32 1.1754944e-38, %v728
        %v730 = vsel %vm727, %v729, %v725
        %v731 = vmul.f32 1.0, %v730
        %v732 = vrcp.pop %v716
        %v733 = vmul.f32 %v716, %v732
        %v734 = vsub.f32 1.0, %v733
        %v735 = vmul.f32 %v732, %v734
        %v736 = vadd.f32 %v732, %v735
        %vm737 = vweird.f32 %v716
        %vm738 = vweird.f32 %v732
        %vm739 = vmor %vm737, %vm738
        %v740 = vsel %vm739, %v732, %v736
        %v741 = vand.u32 2147483647, %v716
        %vm742 = vcmp.eq.f32.partialorder %v741, 8.507059e+37
        %v743 = vand.u32 %v716, 2147483648
        %v744 = vor.u32 1.1754944e-38, %v743
        %v745 = vsel %vm742, %v744, %v740
        %v746 = vmul.f32 1.0, %v745
        %v747 = vadd.f32 %v662, %v571
        %v748 = vadd.f32 %v665, %v571
        %v749 = vmul.f32 %v691, %v747
        %v750 = vmul.f32 %v706, %v748
        %v751 = vadd.f32 %v594, %v749
        %v752 = vadd.f32 %v597, %v750
        %v753 = vtanh.pop %v751
        %v754 = vtanh.pop %v752
        %v755 = vsub.f32 1.0, %v731
        %v756 = vsub.f32 1.0, %v746
        %v757 = vmul.f32 %v755, %v753
        %v758 = vmul.f32 %v756, %v754
        %v759 = vmul.f32 %v731, %v587
        %v760 = vmul.f32 %v746, %v588
        %v761 = vadd.f32 %v757, %v759
        %v762 = vadd.f32 %v758, %v760
        %s763 = scalar_lea.vmem [#allocation2], 16
        %764 = vst [vmem:[%s763] sm:$0xff] %v761
        %765 = vst [vmem:[%s763 + $0x8] sm:$0xff] %v762
        %s766 = scalar_lea.vmem %s334, 96
        %v767 = vld [vmem:[%s766] sm:$0xff]
        %v768 = vld [vmem:[%s766 + $0x8] sm:$0xff]
        %v769 = vld [vmem:[%s766 + $0x10] sm:$0xff]
        %v770 = vld [vmem:[%s766 + $0x18] sm:$0xff]
        %v771 = vld [vmem:[%s766 + $0x20] sm:$0xff]
        %v772 = vld [vmem:[%s766 + $0x28] sm:$0xff]
        %773 = vmatpush.msra.mxu0 %v411
        %774 = vmatpush.msra.mxu0 %v408
        %775 = vmatpush.msra.mxu0 %v405
        %776 = vmatpush.msra.mxu0 %v402
        %777 = vmatpush.msra.mxu0 %v399
        %778 = vmatpush.msra.mxu0 %v396
        %779 = vmatpush.msra.mxu0 %v393
        %780 = vmatpush.msra.mxu0 %v390
        %781 = vmatpush.msra.mxu0 %v387
        %782 = vmatpush.msra.mxu0 %v384
        %783 = vmatpush.msra.mxu0 %v381
        %784 = vmatpush.msra.mxu0 %v378
        %785 = vmatpush.msra.mxu0 %v375
        %786 = vmatpush.msra.mxu0 %v372
        %787 = vmatpush.msra.mxu0 %v369
        %788 = vmatpush.msra.mxu0 %v366
        %789 = vmatmul.f32.gmra.mxu0 %v761
        %v790 = vpop.f32.mrf.mxu0
        %v791 = vadd.f32 0.0, %v790
        %792 = vmatmul.f32.gmra.mxu0 %v762
        %v793 = vpop.f32.mrf.mxu0
        %v794 = vadd.f32 0.0, %v793
        %795 = vdwg.mxu0
        %796 = vmatpush.msra.mxu0 %v412
        %797 = vmatpush.msra.mxu0 %v409
        %798 = vmatpush.msra.mxu0 %v406
        %799 = vmatpush.msra.mxu0 %v403
        %800 = vmatpush.msra.mxu0 %v400
        %801 = vmatpush.msra.mxu0 %v397
        %802 = vmatpush.msra.mxu0 %v394
        %803 = vmatpush.msra.mxu0 %v391
        %804 = vmatpush.msra.mxu0 %v388
        %805 = vmatpush.msra.mxu0 %v385
        %806 = vmatpush.msra.mxu0 %v382
        %807 = vmatpush.msra.mxu0 %v379
        %808 = vmatpush.msra.mxu0 %v376
        %809 = vmatpush.msra.mxu0 %v373
        %810 = vmatpush.msra.mxu0 %v370
        %811 = vmatpush.msra.mxu0 %v367
        %812 = vmatmul.f32.gmra.mxu0 %v761
        %v813 = vpop.f32.mrf.mxu0
        %v814 = vadd.f32 0.0, %v813
        %815 = vmatmul.f32.gmra.mxu0 %v762
        %v816 = vpop.f32.mrf.mxu0
        %v817 = vadd.f32 0.0, %v816
        %818 = vdwg.mxu0
        %819 = vmatpush.msra.mxu0 %v413
        %820 = vmatpush.msra.mxu0 %v410
        %821 = vmatpush.msra.mxu0 %v407
        %822 = vmatpush.msra.mxu0 %v404
        %823 = vmatpush.msra.mxu0 %v401
        %824 = vmatpush.msra.mxu0 %v398
        %825 = vmatpush.msra.mxu0 %v395
        %826 = vmatpush.msra.mxu0 %v392
        %827 = vmatpush.msra.mxu0 %v389
        %828 = vmatpush.msra.mxu0 %v386
        %829 = vmatpush.msra.mxu0 %v383
        %830 = vmatpush.msra.mxu0 %v380
        %831 = vmatpush.msra.mxu0 %v377
        %832 = vmatpush.msra.mxu0 %v374
        %833 = vmatpush.msra.mxu0 %v371
        %834 = vmatpush.msra.mxu0 %v368
        %835 = vmatmul.f32.gmra.mxu0 %v761
        %v836 = vpop.f32.mrf.mxu0
        %v837 = vadd.f32 0.0, %v836
        %838 = vmatmul.f32.gmra.mxu0 %v762
        %v839 = vpop.f32.mrf.mxu0
        %v840 = vadd.f32 0.0, %v839
        %841 = vdwg.mxu0
        %v842 = vadd.f32 %v767, %v791
        %v843 = vadd.f32 %v770, %v794
        %v844 = vxor.u32 %v842, 2147483648
        %v845 = vxor.u32 %v843, 2147483648
        %v846 = vmul.f32 %v844, 1.442695
        %v847 = vpow.pop %v846
        %v848 = vmul.f32 %v845, 1.442695
        %v849 = vpow.pop %v848
        %v850 = vadd.f32 %v847, 1.0
        %v851 = vadd.f32 %v849, 1.0
        %v852 = vrcp.pop %v850
        %v853 = vmul.f32 %v850, %v852
        %v854 = vsub.f32 1.0, %v853
        %v855 = vmul.f32 %v852, %v854
        %v856 = vadd.f32 %v852, %v855
        %vm857 = vweird.f32 %v850
        %vm858 = vweird.f32 %v852
        %vm859 = vmor %vm857, %vm858
        %v860 = vsel %vm859, %v852, %v856
        %v861 = vand.u32 2147483647, %v850
        %vm862 = vcmp.eq.f32.partialorder %v861, 8.507059e+37
        %v863 = vand.u32 %v850, 2147483648
        %v864 = vor.u32 1.1754944e-38, %v863
        %v865 = vsel %vm862, %v864, %v860
        %v866 = vmul.f32 1.0, %v865
        %v867 = vrcp.pop %v851
        %v868 = vmul.f32 %v851, %v867
        %v869 = vsub.f32 1.0, %v868
        %v870 = vmul.f32 %v867, %v869
        %v871 = vadd.f32 %v867, %v870
        %vm872 = vweird.f32 %v851
        %vm873 = vweird.f32 %v867
        %vm874 = vmor %vm872, %vm873
        %v875 = vsel %vm874, %v867, %v871
        %v876 = vand.u32 2147483647, %v851
        %vm877 = vcmp.eq.f32.partialorder %v876, 8.507059e+37
        %v878 = vand.u32 %v851, 2147483648
        %v879 = vor.u32 1.1754944e-38, %v878
        %v880 = vsel %vm877, %v879, %v875
        %v881 = vmul.f32 1.0, %v880
        %v882 = vadd.f32 %v768, %v814
        %v883 = vadd.f32 %v771, %v817
        %v884 = vxor.u32 %v882, 2147483648
        %v885 = vxor.u32 %v883, 2147483648
        %v886 = vmul.f32 %v884, 1.442695
        %v887 = vpow.pop %v886
        %v888 = vmul.f32 %v885, 1.442695
        %v889 = vpow.pop %v888
        %v890 = vadd.f32 %v887, 1.0
        %v891 = vadd.f32 %v889, 1.0
        %v892 = vrcp.pop %v890
        %v893 = vmul.f32 %v890, %v892
        %v894 = vsub.f32 1.0, %v893
        %v895 = vmul.f32 %v892, %v894
        %v896 = vadd.f32 %v892, %v895
        %vm897 = vweird.f32 %v890
        %vm898 = vweird.f32 %v892
        %vm899 = vmor %vm897, %vm898
        %v900 = vsel %vm899, %v892, %v896
        %v901 = vand.u32 2147483647, %v890
        %vm902 = vcmp.eq.f32.partialorder %v901, 8.507059e+37
        %v903 = vand.u32 %v890, 2147483648
        %v904 = vor.u32 1.1754944e-38, %v903
        %v905 = vsel %vm902, %v904, %v900
        %v906 = vmul.f32 1.0, %v905
        %v907 = vrcp.pop %v891
        %v908 = vmul.f32 %v891, %v907
        %v909 = vsub.f32 1.0, %v908
        %v910 = vmul.f32 %v907, %v909
        %v911 = vadd.f32 %v907, %v910
        %vm912 = vweird.f32 %v891
        %vm913 = vweird.f32 %v907
        %vm914 = vmor %vm912, %vm913
        %v915 = vsel %vm914, %v907, %v911
        %v916 = vand.u32 2147483647, %v891
        %vm917 = vcmp.eq.f32.partialorder %v916, 8.507059e+37
        %v918 = vand.u32 %v891, 2147483648
        %v919 = vor.u32 1.1754944e-38, %v918
        %v920 = vsel %vm917, %v919, %v915
        %v921 = vmul.f32 1.0, %v920
        %v922 = vadd.f32 %v837, %v571
        %v923 = vadd.f32 %v840, %v571
        %v924 = vmul.f32 %v866, %v922
        %v925 = vmul.f32 %v881, %v923
        %v926 = vadd.f32 %v769, %v924
        %v927 = vadd.f32 %v772, %v925
        %v928 = vtanh.pop %v926
        %v929 = vtanh.pop %v927
        %v930 = vsub.f32 1.0, %v906
        %v931 = vsub.f32 1.0, %v921
        %v932 = vmul.f32 %v930, %v928
        %v933 = vmul.f32 %v931, %v929
        %v934 = vmul.f32 %v906, %v761
        %v935 = vmul.f32 %v921, %v762
        %v936 = vadd.f32 %v932, %v934
        %v937 = vadd.f32 %v933, %v935
        %s938 = scalar_lea.vmem [#allocation2], 32
        %939 = vst [vmem:[%s938] sm:$0xff] %v936
        %940 = vst [vmem:[%s938 + $0x8] sm:$0xff] %v937
        %s941 = scalar_lea.vmem %s334, 144
        %v942 = vld [vmem:[%s941] sm:$0xff]
        %v943 = vld [vmem:[%s941 + $0x8] sm:$0xff]
        %v944 = vld [vmem:[%s941 + $0x10] sm:$0xff]
        %v945 = vld [vmem:[%s941 + $0x18] sm:$0xff]
        %v946 = vld [vmem:[%s941 + $0x20] sm:$0xff]
        %v947 = vld [vmem:[%s941 + $0x28] sm:$0xff]
        %948 = vmatpush.msra.mxu0 %v411
        %949 = vmatpush.msra.mxu0 %v408
        %950 = vmatpush.msra.mxu0 %v405
        %951 = vmatpush.msra.mxu0 %v402
        %952 = vmatpush.msra.mxu0 %v399
        %953 = vmatpush.msra.mxu0 %v396
        %954 = vmatpush.msra.mxu0 %v393
        %955 = vmatpush.msra.mxu0 %v390
        %956 = vmatpush.msra.mxu0 %v387
        %957 = vmatpush.msra.mxu0 %v384
        %958 = vmatpush.msra.mxu0 %v381
        %959 = vmatpush.msra.mxu0 %v378
        %960 = vmatpush.msra.mxu0 %v375
        %961 = vmatpush.msra.mxu0 %v372
        %962 = vmatpush.msra.mxu0 %v369
        %963 = vmatpush.msra.mxu0 %v366
        %964 = vmatmul.f32.gmra.mxu0 %v936
        %v965 = vpop.f32.mrf.mxu0
        %v966 = vadd.f32 0.0, %v965
        %967 = vmatmul.f32.gmra.mxu0 %v937
        %v968 = vpop.f32.mrf.mxu0
        %v969 = vadd.f32 0.0, %v968
        %970 = vdwg.mxu0
        %971 = vmatpush.msra.mxu0 %v412
        %972 = vmatpush.msra.mxu0 %v409
        %973 = vmatpush.msra.mxu0 %v406
        %974 = vmatpush.msra.mxu0 %v403
        %975 = vmatpush.msra.mxu0 %v400
        %976 = vmatpush.msra.mxu0 %v397
        %977 = vmatpush.msra.mxu0 %v394
        %978 = vmatpush.msra.mxu0 %v391
        %979 = vmatpush.msra.mxu0 %v388
        %980 = vmatpush.msra.mxu0 %v385
        %981 = vmatpush.msra.mxu0 %v382
        %982 = vmatpush.msra.mxu0 %v379
        %983 = vmatpush.msra.mxu0 %v376
        %984 = vmatpush.msra.mxu0 %v373
        %985 = vmatpush.msra.mxu0 %v370
        %986 = vmatpush.msra.mxu0 %v367
        %987 = vmatmul.f32.gmra.mxu0 %v936
        %v988 = vpop.f32.mrf.mxu0
        %v989 = vadd.f32 0.0, %v988
        %990 = vmatmul.f32.gmra.mxu0 %v937
        %v991 = vpop.f32.mrf.mxu0
        %v992 = vadd.f32 0.0, %v991
        %993 = vdwg.mxu0
        %994 = vmatpush.msra.mxu0 %v413
        %995 = vmatpush.msra.mxu0 %v410
        %996 = vmatpush.msra.mxu0 %v407
        %997 = vmatpush.msra.mxu0 %v404
        %998 = vmatpush.msra.mxu0 %v401
        %999 = vmatpush.msra.mxu0 %v398
        %1000 = vmatpush.msra.mxu0 %v395
        %1001 = vmatpush.msra.mxu0 %v392
        %1002 = vmatpush.msra.mxu0 %v389
        %1003 = vmatpush.msra.mxu0 %v386
        %1004 = vmatpush.msra.mxu0 %v383
        %1005 = vmatpush.msra.mxu0 %v380
        %1006 = vmatpush.msra.mxu0 %v377
        %1007 = vmatpush.msra.mxu0 %v374
        %1008 = vmatpush.msra.mxu0 %v371
        %1009 = vmatpush.msra.mxu0 %v368
        %1010 = vmatmul.f32.gmra.mxu0 %v936
        %v1011 = vpop.f32.mrf.mxu0
        %v1012 = vadd.f32 0.0, %v1011
        %1013 = vmatmul.f32.gmra.mxu0 %v937
        %v1014 = vpop.f32.mrf.mxu0
        %v1015 = vadd.f32 0.0, %v1014
        %1016 = vdwg.mxu0
        %v1017 = vadd.f32 %v942, %v966
        %v1018 = vadd.f32 %v945, %v969
        %v1019 = vxor.u32 %v1017, 2147483648
        %v1020 = vxor.u32 %v1018, 2147483648
        %v1021 = vmul.f32 %v1019, 1.442695
        %v1022 = vpow.pop %v1021
        %v1023 = vmul.f32 %v1020, 1.442695
        %v1024 = vpow.pop %v1023
        %v1025 = vadd.f32 %v1022, 1.0
        %v1026 = vadd.f32 %v1024, 1.0
        %v1027 = vrcp.pop %v1025
        %v1028 = vmul.f32 %v1025, %v1027
        %v1029 = vsub.f32 1.0, %v1028
        %v1030 = vmul.f32 %v1027, %v1029
        %v1031 = vadd.f32 %v1027, %v1030
        %vm1032 = vweird.f32 %v1025
        %vm1033 = vweird.f32 %v1027
        %vm1034 = vmor %vm1032, %vm1033
        %v1035 = vsel %vm1034, %v1027, %v1031
        %v1036 = vand.u32 2147483647, %v1025
        %vm1037 = vcmp.eq.f32.partialorder %v1036, 8.507059e+37
        %v1038 = vand.u32 %v1025, 2147483648
        %v1039 = vor.u32 1.1754944e-38, %v1038
        %v1040 = vsel %vm1037, %v1039, %v1035
        %v1041 = vmul.f32 1.0, %v1040
        %v1042 = vrcp.pop %v1026
        %v1043 = vmul.f32 %v1026, %v1042
        %v1044 = vsub.f32 1.0, %v1043
        %v1045 = vmul.f32 %v1042, %v1044
        %v1046 = vadd.f32 %v1042, %v1045
        %vm1047 = vweird.f32 %v1026
        %vm1048 = vweird.f32 %v1042
        %vm1049 = vmor %vm1047, %vm1048
        %v1050 = vsel %vm1049, %v1042, %v1046
        %v1051 = vand.u32 2147483647, %v1026
        %vm1052 = vcmp.eq.f32.partialorder %v1051, 8.507059e+37
        %v1053 = vand.u32 %v1026, 2147483648
        %v1054 = vor.u32 1.1754944e-38, %v1053
        %v1055 = vsel %vm1052, %v1054, %v1050
        %v1056 = vmul.f32 1.0, %v1055
        %v1057 = vadd.f32 %v943, %v989
        %v1058 = vadd.f32 %v946, %v992
        %v1059 = vxor.u32 %v1057, 2147483648
        %v1060 = vxor.u32 %v1058, 2147483648
        %v1061 = vmul.f32 %v1059, 1.442695
        %v1062 = vpow.pop %v1061
        %v1063 = vmul.f32 %v1060, 1.442695
        %v1064 = vpow.pop %v1063
        %v1065 = vadd.f32 %v1062, 1.0
        %v1066 = vadd.f32 %v1064, 1.0
        %v1067 = vrcp.pop %v1065
        %v1068 = vmul.f32 %v1065, %v1067
        %v1069 = vsub.f32 1.0, %v1068
        %v1070 = vmul.f32 %v1067, %v1069
        %v1071 = vadd.f32 %v1067, %v1070
        %vm1072 = vweird.f32 %v1065
        %vm1073 = vweird.f32 %v1067
        %vm1074 = vmor %vm1072, %vm1073
        %v1075 = vsel %vm1074, %v1067, %v1071
        %v1076 = vand.u32 2147483647, %v1065
        %vm1077 = vcmp.eq.f32.partialorder %v1076, 8.507059e+37
        %v1078 = vand.u32 %v1065, 2147483648
        %v1079 = vor.u32 1.1754944e-38, %v1078
        %v1080 = vsel %vm1077, %v1079, %v1075
        %v1081 = vmul.f32 1.0, %v1080
        %v1082 = vrcp.pop %v1066
        %v1083 = vmul.f32 %v1066, %v1082
        %v1084 = vsub.f32 1.0, %v1083
        %v1085 = vmul.f32 %v1082, %v1084
        %v1086 = vadd.f32 %v1082, %v1085
        %vm1087 = vweird.f32 %v1066
        %vm1088 = vweird.f32 %v1082
        %vm1089 = vmor %vm1087, %vm1088
        %v1090 = vsel %vm1089, %v1082, %v1086
        %v1091 = vand.u32 2147483647, %v1066
        %vm1092 = vcmp.eq.f32.partialorder %v1091, 8.507059e+37
        %v1093 = vand.u32 %v1066, 2147483648
        %v1094 = vor.u32 1.1754944e-38, %v1093
        %v1095 = vsel %vm1092, %v1094, %v1090
        %v1096 = vmul.f32 1.0, %v1095
        %v1097 = vadd.f32 %v1012, %v571
        %v1098 = vadd.f32 %v1015, %v571
        %v1099 = vmul.f32 %v1041, %v1097
        %v1100 = vmul.f32 %v1056, %v1098
        %v1101 = vadd.f32 %v944, %v1099
        %v1102 = vadd.f32 %v947, %v1100
        %v1103 = vtanh.pop %v1101
        %v1104 = vtanh.pop %v1102
        %v1105 = vsub.f32 1.0, %v1081
        %v1106 = vsub.f32 1.0, %v1096
        %v1107 = vmul.f32 %v1105, %v1103
        %v1108 = vmul.f32 %v1106, %v1104
        %v1109 = vmul.f32 %v1081, %v936
        %v1110 = vmul.f32 %v1096, %v937
        %v1111 = vadd.f32 %v1107, %v1109
        %v1112 = vadd.f32 %v1108, %v1110
        %s1113 = scalar_lea.vmem [#allocation2], 48
        %1114 = vst [vmem:[%s1113] sm:$0xff] %v1111
        %1115 = vst [vmem:[%s1113 + $0x8] sm:$0xff] %v1112
        %s1116 = scalar_lea.vmem %s334, 192
        %v1117 = vld [vmem:[%s1116] sm:$0xff]
        %v1118 = vld [vmem:[%s1116 + $0x8] sm:$0xff]
        %v1119 = vld [vmem:[%s1116 + $0x10] sm:$0xff]
        %v1120 = vld [vmem:[%s1116 + $0x18] sm:$0xff]
        %v1121 = vld [vmem:[%s1116 + $0x20] sm:$0xff]
        %v1122 = vld [vmem:[%s1116 + $0x28] sm:$0xff]
        %1123 = vmatpush.msra.mxu0 %v411
        %1124 = vmatpush.msra.mxu0 %v408
        %1125 = vmatpush.msra.mxu0 %v405
        %1126 = vmatpush.msra.mxu0 %v402
        %1127 = vmatpush.msra.mxu0 %v399
        %1128 = vmatpush.msra.mxu0 %v396
        %1129 = vmatpush.msra.mxu0 %v393
        %1130 = vmatpush.msra.mxu0 %v390
        %1131 = vmatpush.msra.mxu0 %v387
        %1132 = vmatpush.msra.mxu0 %v384
        %1133 = vmatpush.msra.mxu0 %v381
        %1134 = vmatpush.msra.mxu0 %v378
        %1135 = vmatpush.msra.mxu0 %v375
        %1136 = vmatpush.msra.mxu0 %v372
        %1137 = vmatpush.msra.mxu0 %v369
        %1138 = vmatpush.msra.mxu0 %v366
        %1139 = vmatmul.f32.gmra.mxu0 %v1111
        %v1140 = vpop.f32.mrf.mxu0
        %v1141 = vadd.f32 0.0, %v1140
        %1142 = vmatmul.f32.gmra.mxu0 %v1112
        %v1143 = vpop.f32.mrf.mxu0
        %v1144 = vadd.f32 0.0, %v1143
        %1145 = vdwg.mxu0
        %1146 = vmatpush.msra.mxu0 %v412
        %1147 = vmatpush.msra.mxu0 %v409
        %1148 = vmatpush.msra.mxu0 %v406
        %1149 = vmatpush.msra.mxu0 %v403
        %1150 = vmatpush.msra.mxu0 %v400
        %1151 = vmatpush.msra.mxu0 %v397
        %1152 = vmatpush.msra.mxu0 %v394
        %1153 = vmatpush.msra.mxu0 %v391
        %1154 = vmatpush.msra.mxu0 %v388
        %1155 = vmatpush.msra.mxu0 %v385
        %1156 = vmatpush.msra.mxu0 %v382
        %1157 = vmatpush.msra.mxu0 %v379
        %1158 = vmatpush.msra.mxu0 %v376
        %1159 = vmatpush.msra.mxu0 %v373
        %1160 = vmatpush.msra.mxu0 %v370
        %1161 = vmatpush.msra.mxu0 %v367
        %1162 = vmatmul.f32.gmra.mxu0 %v1111
        %v1163 = vpop.f32.mrf.mxu0
        %v1164 = vadd.f32 0.0, %v1163
        %1165 = vmatmul.f32.gmra.mxu0 %v1112
        %v1166 = vpop.f32.mrf.mxu0
        %v1167 = vadd.f32 0.0, %v1166
        %1168 = vdwg.mxu0
        %1169 = vmatpush.msra.mxu0 %v413
        %1170 = vmatpush.msra.mxu0 %v410
        %1171 = vmatpush.msra.mxu0 %v407
        %1172 = vmatpush.msra.mxu0 %v404
        %1173 = vmatpush.msra.mxu0 %v401
        %1174 = vmatpush.msra.mxu0 %v398
        %1175 = vmatpush.msra.mxu0 %v395
        %1176 = vmatpush.msra.mxu0 %v392
        %1177 = vmatpush.msra.mxu0 %v389
        %1178 = vmatpush.msra.mxu0 %v386
        %1179 = vmatpush.msra.mxu0 %v383
        %1180 = vmatpush.msra.mxu0 %v380
        %1181 = vmatpush.msra.mxu0 %v377
        %1182 = vmatpush.msra.mxu0 %v374
        %1183 = vmatpush.msra.mxu0 %v371
        %1184 = vmatpush.msra.mxu0 %v368
        %1185 = vmatmul.f32.gmra.mxu0 %v1111
        %v1186 = vpop.f32.mrf.mxu0
        %v1187 = vadd.f32 0.0, %v1186
        %1188 = vmatmul.f32.gmra.mxu0 %v1112
        %v1189 = vpop.f32.mrf.mxu0
        %v1190 = vadd.f32 0.0, %v1189
        %1191 = vdwg.mxu0
        %v1192 = vadd.f32 %v1117, %v1141
        %v1193 = vadd.f32 %v1120, %v1144
        %v1194 = vxor.u32 %v1192, 2147483648
        %v1195 = vxor.u32 %v1193, 2147483648
        %v1196 = vmul.f32 %v1194, 1.442695
        %v1197 = vpow.pop %v1196
        %v1198 = vmul.f32 %v1195, 1.442695
        %v1199 = vpow.pop %v1198
        %v1200 = vadd.f32 %v1197, 1.0
        %v1201 = vadd.f32 %v1199, 1.0
        %v1202 = vrcp.pop %v1200
        %v1203 = vmul.f32 %v1200, %v1202
        %v1204 = vsub.f32 1.0, %v1203
        %v1205 = vmul.f32 %v1202, %v1204
        %v1206 = vadd.f32 %v1202, %v1205
        %vm1207 = vweird.f32 %v1200
        %vm1208 = vweird.f32 %v1202
        %vm1209 = vmor %vm1207, %vm1208
        %v1210 = vsel %vm1209, %v1202, %v1206
        %v1211 = vand.u32 2147483647, %v1200
        %vm1212 = vcmp.eq.f32.partialorder %v1211, 8.507059e+37
        %v1213 = vand.u32 %v1200, 2147483648
        %v1214 = vor.u32 1.1754944e-38, %v1213
        %v1215 = vsel %vm1212, %v1214, %v1210
        %v1216 = vmul.f32 1.0, %v1215
        %v1217 = vrcp.pop %v1201
        %v1218 = vmul.f32 %v1201, %v1217
        %v1219 = vsub.f32 1.0, %v1218
        %v1220 = vmul.f32 %v1217, %v1219
        %v1221 = vadd.f32 %v1217, %v1220
        %vm1222 = vweird.f32 %v1201
        %vm1223 = vweird.f32 %v1217
        %vm1224 = vmor %vm1222, %vm1223
        %v1225 = vsel %vm1224, %v1217, %v1221
        %v1226 = vand.u32 2147483647, %v1201
        %vm1227 = vcmp.eq.f32.partialorder %v1226, 8.507059e+37
        %v1228 = vand.u32 %v1201, 2147483648
        %v1229 = vor.u32 1.1754944e-38, %v1228
        %v1230 = vsel %vm1227, %v1229, %v1225
        %v1231 = vmul.f32 1.0, %v1230
        %v1232 = vadd.f32 %v1118, %v1164
        %v1233 = vadd.f32 %v1121, %v1167
        %v1234 = vxor.u32 %v1232, 2147483648
        %v1235 = vxor.u32 %v1233, 2147483648
        %v1236 = vmul.f32 %v1234, 1.442695
        %v1237 = vpow.pop %v1236
        %v1238 = vmul.f32 %v1235, 1.442695
        %v1239 = vpow.pop %v1238
        %v1240 = vadd.f32 %v1237, 1.0
        %v1241 = vadd.f32 %v1239, 1.0
        %v1242 = vrcp.pop %v1240
        %v1243 = vmul.f32 %v1240, %v1242
        %v1244 = vsub.f32 1.0, %v1243
        %v1245 = vmul.f32 %v1242, %v1244
        %v1246 = vadd.f32 %v1242, %v1245
        %vm1247 = vweird.f32 %v1240
        %vm1248 = vweird.f32 %v1242
        %vm1249 = vmor %vm1247, %vm1248
        %v1250 = vsel %vm1249, %v1242, %v1246
        %v1251 = vand.u32 2147483647, %v1240
        %vm1252 = vcmp.eq.f32.partialorder %v1251, 8.507059e+37
        %v1253 = vand.u32 %v1240, 2147483648
        %v1254 = vor.u32 1.1754944e-38, %v1253
        %v1255 = vsel %vm1252, %v1254, %v1250
        %v1256 = vmul.f32 1.0, %v1255
        %v1257 = vrcp.pop %v1241
        %v1258 = vmul.f32 %v1241, %v1257
        %v1259 = vsub.f32 1.0, %v1258
        %v1260 = vmul.f32 %v1257, %v1259
        %v1261 = vadd.f32 %v1257, %v1260
        %vm1262 = vweird.f32 %v1241
        %vm1263 = vweird.f32 %v1257
        %vm1264 = vmor %vm1262, %vm1263
        %v1265 = vsel %vm1264, %v1257, %v1261
        %v1266 = vand.u32 2147483647, %v1241
        %vm1267 = vcmp.eq.f32.partialorder %v1266, 8.507059e+37
        %v1268 = vand.u32 %v1241, 2147483648
        %v1269 = vor.u32 1.1754944e-38, %v1268
        %v1270 = vsel %vm1267, %v1269, %v1265
        %v1271 = vmul.f32 1.0, %v1270
        %v1272 = vadd.f32 %v1187, %v571
        %v1273 = vadd.f32 %v1190, %v571
        %v1274 = vmul.f32 %v1216, %v1272
        %v1275 = vmul.f32 %v1231, %v1273
        %v1276 = vadd.f32 %v1119, %v1274
        %v1277 = vadd.f32 %v1122, %v1275
        %v1278 = vtanh.pop %v1276
        %v1279 = vtanh.pop %v1277
        %v1280 = vsub.f32 1.0, %v1256
        %v1281 = vsub.f32 1.0, %v1271
        %v1282 = vmul.f32 %v1280, %v1278
        %v1283 = vmul.f32 %v1281, %v1279
        %v1284 = vmul.f32 %v1256, %v1111
        %v1285 = vmul.f32 %v1271, %v1112
        %v1286 = vadd.f32 %v1282, %v1284
        %v1287 = vadd.f32 %v1283, %v1285
        %s1288 = scalar_lea.vmem [#allocation2], 64
        %1289 = vst [vmem:[%s1288] sm:$0xff] %v1286
        %1290 = vst [vmem:[%s1288 + $0x8] sm:$0xff] %v1287
        %s1291 = scalar_lea.vmem %s334, 240
        %v1292 = vld [vmem:[%s1291] sm:$0xff]
        %v1293 = vld [vmem:[%s1291 + $0x8] sm:$0xff]
        %v1294 = vld [vmem:[%s1291 + $0x10] sm:$0xff]
        %v1295 = vld [vmem:[%s1291 + $0x18] sm:$0xff]
        %v1296 = vld [vmem:[%s1291 + $0x20] sm:$0xff]
        %v1297 = vld [vmem:[%s1291 + $0x28] sm:$0xff]
        %1298 = vmatpush.msra.mxu0 %v411
        %1299 = vmatpush.msra.mxu0 %v408
        %1300 = vmatpush.msra.mxu0 %v405
        %1301 = vmatpush.msra.mxu0 %v402
        %1302 = vmatpush.msra.mxu0 %v399
        %1303 = vmatpush.msra.mxu0 %v396
        %1304 = vmatpush.msra.mxu0 %v393
        %1305 = vmatpush.msra.mxu0 %v390
        %1306 = vmatpush.msra.mxu0 %v387
        %1307 = vmatpush.msra.mxu0 %v384
        %1308 = vmatpush.msra.mxu0 %v381
        %1309 = vmatpush.msra.mxu0 %v378
        %1310 = vmatpush.msra.mxu0 %v375
        %1311 = vmatpush.msra.mxu0 %v372
        %1312 = vmatpush.msra.mxu0 %v369
        %1313 = vmatpush.msra.mxu0 %v366
        %1314 = vmatmul.f32.gmra.mxu0 %v1286
        %v1315 = vpop.f32.mrf.mxu0
        %v1316 = vadd.f32 0.0, %v1315
        %1317 = vmatmul.f32.gmra.mxu0 %v1287
        %v1318 = vpop.f32.mrf.mxu0
        %v1319 = vadd.f32 0.0, %v1318
        %1320 = vdwg.mxu0
        %1321 = vmatpush.msra.mxu0 %v412
        %1322 = vmatpush.msra.mxu0 %v409
        %1323 = vmatpush.msra.mxu0 %v406
        %1324 = vmatpush.msra.mxu0 %v403
        %1325 = vmatpush.msra.mxu0 %v400
        %1326 = vmatpush.msra.mxu0 %v397
        %1327 = vmatpush.msra.mxu0 %v394
        %1328 = vmatpush.msra.mxu0 %v391
        %1329 = vmatpush.msra.mxu0 %v388
        %1330 = vmatpush.msra.mxu0 %v385
        %1331 = vmatpush.msra.mxu0 %v382
        %1332 = vmatpush.msra.mxu0 %v379
        %1333 = vmatpush.msra.mxu0 %v376
        %1334 = vmatpush.msra.mxu0 %v373
        %1335 = vmatpush.msra.mxu0 %v370
        %1336 = vmatpush.msra.mxu0 %v367
        %1337 = vmatmul.f32.gmra.mxu0 %v1286
        %v1338 = vpop.f32.mrf.mxu0
        %v1339 = vadd.f32 0.0, %v1338
        %1340 = vmatmul.f32.gmra.mxu0 %v1287
        %v1341 = vpop.f32.mrf.mxu0
        %v1342 = vadd.f32 0.0, %v1341
        %1343 = vdwg.mxu0
        %1344 = vmatpush.msra.mxu0 %v413
        %1345 = vmatpush.msra.mxu0 %v410
        %1346 = vmatpush.msra.mxu0 %v407
        %1347 = vmatpush.msra.mxu0 %v404
        %1348 = vmatpush.msra.mxu0 %v401
        %1349 = vmatpush.msra.mxu0 %v398
        %1350 = vmatpush.msra.mxu0 %v395
        %1351 = vmatpush.msra.mxu0 %v392
        %1352 = vmatpush.msra.mxu0 %v389
        %1353 = vmatpush.msra.mxu0 %v386
        %1354 = vmatpush.msra.mxu0 %v383
        %1355 = vmatpush.msra.mxu0 %v380
        %1356 = vmatpush.msra.mxu0 %v377
        %1357 = vmatpush.msra.mxu0 %v374
        %1358 = vmatpush.msra.mxu0 %v371
        %1359 = vmatpush.msra.mxu0 %v368
        %1360 = vmatmul.f32.gmra.mxu0 %v1286
        %v1361 = vpop.f32.mrf.mxu0
        %v1362 = vadd.f32 0.0, %v1361
        %1363 = vmatmul.f32.gmra.mxu0 %v1287
        %v1364 = vpop.f32.mrf.mxu0
        %v1365 = vadd.f32 0.0, %v1364
        %1366 = vdwg.mxu0
        %v1367 = vadd.f32 %v1292, %v1316
        %v1368 = vadd.f32 %v1295, %v1319
        %v1369 = vxor.u32 %v1367, 2147483648
        %v1370 = vxor.u32 %v1368, 2147483648
        %v1371 = vmul.f32 %v1369, 1.442695
        %v1372 = vpow.pop %v1371
        %v1373 = vmul.f32 %v1370, 1.442695
        %v1374 = vpow.pop %v1373
        %v1375 = vadd.f32 %v1372, 1.0
        %v1376 = vadd.f32 %v1374, 1.0
        %v1377 = vrcp.pop %v1375
        %v1378 = vmul.f32 %v1375, %v1377
        %v1379 = vsub.f32 1.0, %v1378
        %v1380 = vmul.f32 %v1377, %v1379
        %v1381 = vadd.f32 %v1377, %v1380
        %vm1382 = vweird.f32 %v1375
        %vm1383 = vweird.f32 %v1377
        %vm1384 = vmor %vm1382, %vm1383
        %v1385 = vsel %vm1384, %v1377, %v1381
        %v1386 = vand.u32 2147483647, %v1375
        %vm1387 = vcmp.eq.f32.partialorder %v1386, 8.507059e+37
        %v1388 = vand.u32 %v1375, 2147483648
        %v1389 = vor.u32 1.1754944e-38, %v1388
        %v1390 = vsel %vm1387, %v1389, %v1385
        %v1391 = vmul.f32 1.0, %v1390
        %v1392 = vrcp.pop %v1376
        %v1393 = vmul.f32 %v1376, %v1392
        %v1394 = vsub.f32 1.0, %v1393
        %v1395 = vmul.f32 %v1392, %v1394
        %v1396 = vadd.f32 %v1392, %v1395
        %vm1397 = vweird.f32 %v1376
        %vm1398 = vweird.f32 %v1392
        %vm1399 = vmor %vm1397, %vm1398
        %v1400 = vsel %vm1399, %v1392, %v1396
        %v1401 = vand.u32 2147483647, %v1376
        %vm1402 = vcmp.eq.f32.partialorder %v1401, 8.507059e+37
        %v1403 = vand.u32 %v1376, 2147483648
        %v1404 = vor.u32 1.1754944e-38, %v1403
        %v1405 = vsel %vm1402, %v1404, %v1400
        %v1406 = vmul.f32 1.0, %v1405
        %v1407 = vadd.f32 %v1293, %v1339
        %v1408 = vadd.f32 %v1296, %v1342
        %v1409 = vxor.u32 %v1407, 2147483648
        %v1410 = vxor.u32 %v1408, 2147483648
        %v1411 = vmul.f32 %v1409, 1.442695
        %v1412 = vpow.pop %v1411
        %v1413 = vmul.f32 %v1410, 1.442695
        %v1414 = vpow.pop %v1413
        %v1415 = vadd.f32 %v1412, 1.0
        %v1416 = vadd.f32 %v1414, 1.0
        %v1417 = vrcp.pop %v1415
        %v1418 = vmul.f32 %v1415, %v1417
        %v1419 = vsub.f32 1.0, %v1418
        %v1420 = vmul.f32 %v1417, %v1419
        %v1421 = vadd.f32 %v1417, %v1420
        %vm1422 = vweird.f32 %v1415
        %vm1423 = vweird.f32 %v1417
        %vm1424 = vmor %vm1422, %vm1423
        %v1425 = vsel %vm1424, %v1417, %v1421
        %v1426 = vand.u32 2147483647, %v1415
        %vm1427 = vcmp.eq.f32.partialorder %v1426, 8.507059e+37
        %v1428 = vand.u32 %v1415, 2147483648
        %v1429 = vor.u32 1.1754944e-38, %v1428
        %v1430 = vsel %vm1427, %v1429, %v1425
        %v1431 = vmul.f32 1.0, %v1430
        %v1432 = vrcp.pop %v1416
        %v1433 = vmul.f32 %v1416, %v1432
        %v1434 = vsub.f32 1.0, %v1433
        %v1435 = vmul.f32 %v1432, %v1434
        %v1436 = vadd.f32 %v1432, %v1435
        %vm1437 = vweird.f32 %v1416
        %vm1438 = vweird.f32 %v1432
        %vm1439 = vmor %vm1437, %vm1438
        %v1440 = vsel %vm1439, %v1432, %v1436
        %v1441 = vand.u32 2147483647, %v1416
        %vm1442 = vcmp.eq.f32.partialorder %v1441, 8.507059e+37
        %v1443 = vand.u32 %v1416, 2147483648
        %v1444 = vor.u32 1.1754944e-38, %v1443
        %v1445 = vsel %vm1442, %v1444, %v1440
        %v1446 = vmul.f32 1.0, %v1445
        %v1447 = vadd.f32 %v1362, %v571
        %v1448 = vadd.f32 %v1365, %v571
        %v1449 = vmul.f32 %v1391, %v1447
        %v1450 = vmul.f32 %v1406, %v1448
        %v1451 = vadd.f32 %v1294, %v1449
        %v1452 = vadd.f32 %v1297, %v1450
        %v1453 = vtanh.pop %v1451
        %v1454 = vtanh.pop %v1452
        %v1455 = vsub.f32 1.0, %v1431
        %v1456 = vsub.f32 1.0, %v1446
        %v1457 = vmul.f32 %v1455, %v1453
        %v1458 = vmul.f32 %v1456, %v1454
        %v1459 = vmul.f32 %v1431, %v1286
        %v1460 = vmul.f32 %v1446, %v1287
        %v1461 = vadd.f32 %v1457, %v1459
        %v1462 = vadd.f32 %v1458, %v1460
        %s1463 = scalar_lea.vmem [#allocation2], 80
        %1464 = vst [vmem:[%s1463] sm:$0xff] %v1461
        %1465 = vst [vmem:[%s1463 + $0x8] sm:$0xff] %v1462
        %s1466 = scalar_lea.vmem %s334, 288
        %v1467 = vld [vmem:[%s1466] sm:$0xff]
        %v1468 = vld [vmem:[%s1466 + $0x8] sm:$0xff]
        %v1469 = vld [vmem:[%s1466 + $0x10] sm:$0xff]
        %v1470 = vld [vmem:[%s1466 + $0x18] sm:$0xff]
        %v1471 = vld [vmem:[%s1466 + $0x20] sm:$0xff]
        %v1472 = vld [vmem:[%s1466 + $0x28] sm:$0xff]
        %1473 = vmatpush.msra.mxu0 %v411
        %1474 = vmatpush.msra.mxu0 %v408
        %1475 = vmatpush.msra.mxu0 %v405
        %1476 = vmatpush.msra.mxu0 %v402
        %1477 = vmatpush.msra.mxu0 %v399
        %1478 = vmatpush.msra.mxu0 %v396
        %1479 = vmatpush.msra.mxu0 %v393
        %1480 = vmatpush.msra.mxu0 %v390
        %1481 = vmatpush.msra.mxu0 %v387
        %1482 = vmatpush.msra.mxu0 %v384
        %1483 = vmatpush.msra.mxu0 %v381
        %1484 = vmatpush.msra.mxu0 %v378
        %1485 = vmatpush.msra.mxu0 %v375
        %1486 = vmatpush.msra.mxu0 %v372
        %1487 = vmatpush.msra.mxu0 %v369
        %1488 = vmatpush.msra.mxu0 %v366
        %1489 = vmatmul.f32.gmra.mxu0 %v1461
        %v1490 = vpop.f32.mrf.mxu0
        %v1491 = vadd.f32 0.0, %v1490
        %1492 = vmatmul.f32.gmra.mxu0 %v1462
        %v1493 = vpop.f32.mrf.mxu0
        %v1494 = vadd.f32 0.0, %v1493
        %1495 = vdwg.mxu0
        %1496 = vmatpush.msra.mxu0 %v412
        %1497 = vmatpush.msra.mxu0 %v409
        %1498 = vmatpush.msra.mxu0 %v406
        %1499 = vmatpush.msra.mxu0 %v403
        %1500 = vmatpush.msra.mxu0 %v400
        %1501 = vmatpush.msra.mxu0 %v397
        %1502 = vmatpush.msra.mxu0 %v394
        %1503 = vmatpush.msra.mxu0 %v391
        %1504 = vmatpush.msra.mxu0 %v388
        %1505 = vmatpush.msra.mxu0 %v385
        %1506 = vmatpush.msra.mxu0 %v382
        %1507 = vmatpush.msra.mxu0 %v379
        %1508 = vmatpush.msra.mxu0 %v376
        %1509 = vmatpush.msra.mxu0 %v373
        %1510 = vmatpush.msra.mxu0 %v370
        %1511 = vmatpush.msra.mxu0 %v367
        %1512 = vmatmul.f32.gmra.mxu0 %v1461
        %v1513 = vpop.f32.mrf.mxu0
        %v1514 = vadd.f32 0.0, %v1513
        %1515 = vmatmul.f32.gmra.mxu0 %v1462
        %v1516 = vpop.f32.mrf.mxu0
        %v1517 = vadd.f32 0.0, %v1516
        %1518 = vdwg.mxu0
        %1519 = vmatpush.msra.mxu0 %v413
        %1520 = vmatpush.msra.mxu0 %v410
        %1521 = vmatpush.msra.mxu0 %v407
        %1522 = vmatpush.msra.mxu0 %v404
        %1523 = vmatpush.msra.mxu0 %v401
        %1524 = vmatpush.msra.mxu0 %v398
        %1525 = vmatpush.msra.mxu0 %v395
        %1526 = vmatpush.msra.mxu0 %v392
        %1527 = vmatpush.msra.mxu0 %v389
        %1528 = vmatpush.msra.mxu0 %v386
        %1529 = vmatpush.msra.mxu0 %v383
        %1530 = vmatpush.msra.mxu0 %v380
        %1531 = vmatpush.msra.mxu0 %v377
        %1532 = vmatpush.msra.mxu0 %v374
        %1533 = vmatpush.msra.mxu0 %v371
        %1534 = vmatpush.msra.mxu0 %v368
        %1535 = vmatmul.f32.gmra.mxu0 %v1461
        %v1536 = vpop.f32.mrf.mxu0
        %v1537 = vadd.f32 0.0, %v1536
        %1538 = vmatmul.f32.gmra.mxu0 %v1462
        %v1539 = vpop.f32.mrf.mxu0
        %v1540 = vadd.f32 0.0, %v1539
        %1541 = vdwg.mxu0
        %v1542 = vadd.f32 %v1467, %v1491
        %v1543 = vadd.f32 %v1470, %v1494
        %v1544 = vxor.u32 %v1542, 2147483648
        %v1545 = vxor.u32 %v1543, 2147483648
        %v1546 = vmul.f32 %v1544, 1.442695
        %v1547 = vpow.pop %v1546
        %v1548 = vmul.f32 %v1545, 1.442695
        %v1549 = vpow.pop %v1548
        %v1550 = vadd.f32 %v1547, 1.0
        %v1551 = vadd.f32 %v1549, 1.0
        %v1552 = vrcp.pop %v1550
        %v1553 = vmul.f32 %v1550, %v1552
        %v1554 = vsub.f32 1.0, %v1553
        %v1555 = vmul.f32 %v1552, %v1554
        %v1556 = vadd.f32 %v1552, %v1555
        %vm1557 = vweird.f32 %v1550
        %vm1558 = vweird.f32 %v1552
        %vm1559 = vmor %vm1557, %vm1558
        %v1560 = vsel %vm1559, %v1552, %v1556
        %v1561 = vand.u32 2147483647, %v1550
        %vm1562 = vcmp.eq.f32.partialorder %v1561, 8.507059e+37
        %v1563 = vand.u32 %v1550, 2147483648
        %v1564 = vor.u32 1.1754944e-38, %v1563
        %v1565 = vsel %vm1562, %v1564, %v1560
        %v1566 = vmul.f32 1.0, %v1565
        %v1567 = vrcp.pop %v1551
        %v1568 = vmul.f32 %v1551, %v1567
        %v1569 = vsub.f32 1.0, %v1568
        %v1570 = vmul.f32 %v1567, %v1569
        %v1571 = vadd.f32 %v1567, %v1570
        %vm1572 = vweird.f32 %v1551
        %vm1573 = vweird.f32 %v1567
        %vm1574 = vmor %vm1572, %vm1573
        %v1575 = vsel %vm1574, %v1567, %v1571
        %v1576 = vand.u32 2147483647, %v1551
        %vm1577 = vcmp.eq.f32.partialorder %v1576, 8.507059e+37
        %v1578 = vand.u32 %v1551, 2147483648
        %v1579 = vor.u32 1.1754944e-38, %v1578
        %v1580 = vsel %vm1577, %v1579, %v1575
        %v1581 = vmul.f32 1.0, %v1580
        %v1582 = vadd.f32 %v1468, %v1514
        %v1583 = vadd.f32 %v1471, %v1517
        %v1584 = vxor.u32 %v1582, 2147483648
        %v1585 = vxor.u32 %v1583, 2147483648
        %v1586 = vmul.f32 %v1584, 1.442695
        %v1587 = vpow.pop %v1586
        %v1588 = vmul.f32 %v1585, 1.442695
        %v1589 = vpow.pop %v1588
        %v1590 = vadd.f32 %v1587, 1.0
        %v1591 = vadd.f32 %v1589, 1.0
        %v1592 = vrcp.pop %v1590
        %v1593 = vmul.f32 %v1590, %v1592
        %v1594 = vsub.f32 1.0, %v1593
        %v1595 = vmul.f32 %v1592, %v1594
        %v1596 = vadd.f32 %v1592, %v1595
        %vm1597 = vweird.f32 %v1590
        %vm1598 = vweird.f32 %v1592
        %vm1599 = vmor %vm1597, %vm1598
        %v1600 = vsel %vm1599, %v1592, %v1596
        %v1601 = vand.u32 2147483647, %v1590
        %vm1602 = vcmp.eq.f32.partialorder %v1601, 8.507059e+37
        %v1603 = vand.u32 %v1590, 2147483648
        %v1604 = vor.u32 1.1754944e-38, %v1603
        %v1605 = vsel %vm1602, %v1604, %v1600
        %v1606 = vmul.f32 1.0, %v1605
        %v1607 = vrcp.pop %v1591
        %v1608 = vmul.f32 %v1591, %v1607
        %v1609 = vsub.f32 1.0, %v1608
        %v1610 = vmul.f32 %v1607, %v1609
        %v1611 = vadd.f32 %v1607, %v1610
        %vm1612 = vweird.f32 %v1591
        %vm1613 = vweird.f32 %v1607
        %vm1614 = vmor %vm1612, %vm1613
        %v1615 = vsel %vm1614, %v1607, %v1611
        %v1616 = vand.u32 2147483647, %v1591
        %vm1617 = vcmp.eq.f32.partialorder %v1616, 8.507059e+37
        %v1618 = vand.u32 %v1591, 2147483648
        %v1619 = vor.u32 1.1754944e-38, %v1618
        %v1620 = vsel %vm1617, %v1619, %v1615
        %v1621 = vmul.f32 1.0, %v1620
        %v1622 = vadd.f32 %v1537, %v571
        %v1623 = vadd.f32 %v1540, %v571
        %v1624 = vmul.f32 %v1566, %v1622
        %v1625 = vmul.f32 %v1581, %v1623
        %v1626 = vadd.f32 %v1469, %v1624
        %v1627 = vadd.f32 %v1472, %v1625
        %v1628 = vtanh.pop %v1626
        %v1629 = vtanh.pop %v1627
        %v1630 = vsub.f32 1.0, %v1606
        %v1631 = vsub.f32 1.0, %v1621
        %v1632 = vmul.f32 %v1630, %v1628
        %v1633 = vmul.f32 %v1631, %v1629
        %v1634 = vmul.f32 %v1606, %v1461
        %v1635 = vmul.f32 %v1621, %v1462
        %v1636 = vadd.f32 %v1632, %v1634
        %v1637 = vadd.f32 %v1633, %v1635
        %s1638 = scalar_lea.vmem [#allocation2], 96
        %1639 = vst [vmem:[%s1638] sm:$0xff] %v1636
        %1640 = vst [vmem:[%s1638 + $0x8] sm:$0xff] %v1637
        %s1641 = scalar_lea.vmem %s334, 336
        %v1642 = vld [vmem:[%s1641] sm:$0xff]
        %v1643 = vld [vmem:[%s1641 + $0x8] sm:$0xff]
        %v1644 = vld [vmem:[%s1641 + $0x10] sm:$0xff]
        %v1645 = vld [vmem:[%s1641 + $0x18] sm:$0xff]
        %v1646 = vld [vmem:[%s1641 + $0x20] sm:$0xff]
        %v1647 = vld [vmem:[%s1641 + $0x28] sm:$0xff]
        %1648 = vmatpush.msra.mxu0 %v411
        %1649 = vmatpush.msra.mxu0 %v408
        %1650 = vmatpush.msra.mxu0 %v405
        %1651 = vmatpush.msra.mxu0 %v402
        %1652 = vmatpush.msra.mxu0 %v399
        %1653 = vmatpush.msra.mxu0 %v396
        %1654 = vmatpush.msra.mxu0 %v393
        %1655 = vmatpush.msra.mxu0 %v390
        %1656 = vmatpush.msra.mxu0 %v387
        %1657 = vmatpush.msra.mxu0 %v384
        %1658 = vmatpush.msra.mxu0 %v381
        %1659 = vmatpush.msra.mxu0 %v378
        %1660 = vmatpush.msra.mxu0 %v375
        %1661 = vmatpush.msra.mxu0 %v372
        %1662 = vmatpush.msra.mxu0 %v369
        %1663 = vmatpush.msra.mxu0 %v366
        %1664 = vmatmul.f32.gmra.mxu0 %v1636
        %v1665 = vpop.f32.mrf.mxu0
        %v1666 = vadd.f32 0.0, %v1665
        %1667 = vmatmul.f32.gmra.mxu0 %v1637
        %v1668 = vpop.f32.mrf.mxu0
        %v1669 = vadd.f32 0.0, %v1668
        %1670 = vdwg.mxu0
        %1671 = vmatpush.msra.mxu0 %v412
        %1672 = vmatpush.msra.mxu0 %v409
        %1673 = vmatpush.msra.mxu0 %v406
        %1674 = vmatpush.msra.mxu0 %v403
        %1675 = vmatpush.msra.mxu0 %v400
        %1676 = vmatpush.msra.mxu0 %v397
        %1677 = vmatpush.msra.mxu0 %v394
        %1678 = vmatpush.msra.mxu0 %v391
        %1679 = vmatpush.msra.mxu0 %v388
        %1680 = vmatpush.msra.mxu0 %v385
        %1681 = vmatpush.msra.mxu0 %v382
        %1682 = vmatpush.msra.mxu0 %v379
        %1683 = vmatpush.msra.mxu0 %v376
        %1684 = vmatpush.msra.mxu0 %v373
        %1685 = vmatpush.msra.mxu0 %v370
        %1686 = vmatpush.msra.mxu0 %v367
        %1687 = vmatmul.f32.gmra.mxu0 %v1636
        %v1688 = vpop.f32.mrf.mxu0
        %v1689 = vadd.f32 0.0, %v1688
        %1690 = vmatmul.f32.gmra.mxu0 %v1637
        %v1691 = vpop.f32.mrf.mxu0
        %v1692 = vadd.f32 0.0, %v1691
        %1693 = vdwg.mxu0
        %1694 = vmatpush.msra.mxu0 %v413
        %1695 = vmatpush.msra.mxu0 %v410
        %1696 = vmatpush.msra.mxu0 %v407
        %1697 = vmatpush.msra.mxu0 %v404
        %1698 = vmatpush.msra.mxu0 %v401
        %1699 = vmatpush.msra.mxu0 %v398
        %1700 = vmatpush.msra.mxu0 %v395
        %1701 = vmatpush.msra.mxu0 %v392
        %1702 = vmatpush.msra.mxu0 %v389
        %1703 = vmatpush.msra.mxu0 %v386
        %1704 = vmatpush.msra.mxu0 %v383
        %1705 = vmatpush.msra.mxu0 %v380
        %1706 = vmatpush.msra.mxu0 %v377
        %1707 = vmatpush.msra.mxu0 %v374
        %1708 = vmatpush.msra.mxu0 %v371
        %1709 = vmatpush.msra.mxu0 %v368
        %1710 = vmatmul.f32.gmra.mxu0 %v1636
        %v1711 = vpop.f32.mrf.mxu0
        %v1712 = vadd.f32 0.0, %v1711
        %1713 = vmatmul.f32.gmra.mxu0 %v1637
        %v1714 = vpop.f32.mrf.mxu0
        %v1715 = vadd.f32 0.0, %v1714
        %1716 = vdwg.mxu0
        %v1717 = vadd.f32 %v1642, %v1666
        %v1718 = vadd.f32 %v1645, %v1669
        %v1719 = vxor.u32 %v1717, 2147483648
        %v1720 = vxor.u32 %v1718, 2147483648
        %v1721 = vmul.f32 %v1719, 1.442695
        %v1722 = vpow.pop %v1721
        %v1723 = vmul.f32 %v1720, 1.442695
        %v1724 = vpow.pop %v1723
        %v1725 = vadd.f32 %v1722, 1.0
        %v1726 = vadd.f32 %v1724, 1.0
        %v1727 = vrcp.pop %v1725
        %v1728 = vmul.f32 %v1725, %v1727
        %v1729 = vsub.f32 1.0, %v1728
        %v1730 = vmul.f32 %v1727, %v1729
        %v1731 = vadd.f32 %v1727, %v1730
        %vm1732 = vweird.f32 %v1725
        %vm1733 = vweird.f32 %v1727
        %vm1734 = vmor %vm1732, %vm1733
        %v1735 = vsel %vm1734, %v1727, %v1731
        %v1736 = vand.u32 2147483647, %v1725
        %vm1737 = vcmp.eq.f32.partialorder %v1736, 8.507059e+37
        %v1738 = vand.u32 %v1725, 2147483648
        %v1739 = vor.u32 1.1754944e-38, %v1738
        %v1740 = vsel %vm1737, %v1739, %v1735
        %v1741 = vmul.f32 1.0, %v1740
        %v1742 = vrcp.pop %v1726
        %v1743 = vmul.f32 %v1726, %v1742
        %v1744 = vsub.f32 1.0, %v1743
        %v1745 = vmul.f32 %v1742, %v1744
        %v1746 = vadd.f32 %v1742, %v1745
        %vm1747 = vweird.f32 %v1726
        %vm1748 = vweird.f32 %v1742
        %vm1749 = vmor %vm1747, %vm1748
        %v1750 = vsel %vm1749, %v1742, %v1746
        %v1751 = vand.u32 2147483647, %v1726
        %vm1752 = vcmp.eq.f32.partialorder %v1751, 8.507059e+37
        %v1753 = vand.u32 %v1726, 2147483648
        %v1754 = vor.u32 1.1754944e-38, %v1753
        %v1755 = vsel %vm1752, %v1754, %v1750
        %v1756 = vmul.f32 1.0, %v1755
        %v1757 = vadd.f32 %v1643, %v1689
        %v1758 = vadd.f32 %v1646, %v1692
        %v1759 = vxor.u32 %v1757, 2147483648
        %v1760 = vxor.u32 %v1758, 2147483648
        %v1761 = vmul.f32 %v1759, 1.442695
        %v1762 = vpow.pop %v1761
        %v1763 = vmul.f32 %v1760, 1.442695
        %v1764 = vpow.pop %v1763
        %v1765 = vadd.f32 %v1762, 1.0
        %v1766 = vadd.f32 %v1764, 1.0
        %v1767 = vrcp.pop %v1765
        %v1768 = vmul.f32 %v1765, %v1767
        %v1769 = vsub.f32 1.0, %v1768
        %v1770 = vmul.f32 %v1767, %v1769
        %v1771 = vadd.f32 %v1767, %v1770
        %vm1772 = vweird.f32 %v1765
        %vm1773 = vweird.f32 %v1767
        %vm1774 = vmor %vm1772, %vm1773
        %v1775 = vsel %vm1774, %v1767, %v1771
        %v1776 = vand.u32 2147483647, %v1765
        %vm1777 = vcmp.eq.f32.partialorder %v1776, 8.507059e+37
        %v1778 = vand.u32 %v1765, 2147483648
        %v1779 = vor.u32 1.1754944e-38, %v1778
        %v1780 = vsel %vm1777, %v1779, %v1775
        %v1781 = vmul.f32 1.0, %v1780
        %v1782 = vrcp.pop %v1766
        %v1783 = vmul.f32 %v1766, %v1782
        %v1784 = vsub.f32 1.0, %v1783
        %v1785 = vmul.f32 %v1782, %v1784
        %v1786 = vadd.f32 %v1782, %v1785
        %vm1787 = vweird.f32 %v1766
        %vm1788 = vweird.f32 %v1782
        %vm1789 = vmor %vm1787, %vm1788
        %v1790 = vsel %vm1789, %v1782, %v1786
        %v1791 = vand.u32 2147483647, %v1766
        %vm1792 = vcmp.eq.f32.partialorder %v1791, 8.507059e+37
        %v1793 = vand.u32 %v1766, 2147483648
        %v1794 = vor.u32 1.1754944e-38, %v1793
        %v1795 = vsel %vm1792, %v1794, %v1790
        %v1796 = vmul.f32 1.0, %v1795
        %v1797 = vadd.f32 %v1712, %v571
        %v1798 = vadd.f32 %v1715, %v571
        %v1799 = vmul.f32 %v1741, %v1797
        %v1800 = vmul.f32 %v1756, %v1798
        %v1801 = vadd.f32 %v1644, %v1799
        %v1802 = vadd.f32 %v1647, %v1800
        %v1803 = vtanh.pop %v1801
        %v1804 = vtanh.pop %v1802
        %v1805 = vsub.f32 1.0, %v1781
        %v1806 = vsub.f32 1.0, %v1796
        %v1807 = vmul.f32 %v1805, %v1803
        %v1808 = vmul.f32 %v1806, %v1804
        %v1809 = vmul.f32 %v1781, %v1636
        %v1810 = vmul.f32 %v1796, %v1637
        %v1811 = vadd.f32 %v1807, %v1809
        %v1812 = vadd.f32 %v1808, %v1810
        %s1813 = scalar_lea.vmem [#allocation2], 112
        %1814 = vst [vmem:[%s1813] sm:$0xff] %v1811
        %1815 = vst [vmem:[%s1813 + $0x8] sm:$0xff] %v1812
        %1816 = vst [vmem:[#allocation3] sm:$0xff] %v1811
        %1817 = vst [vmem:[#allocation3 + $0x8] sm:$0xff] %v1812
        %v1818 = vld [vmem:[#allocation2] sm:$0xff]
        %v1819 = vld [vmem:[#allocation2 + $0x8] sm:$0xff]
        %v1820 = vld [vmem:[#allocation2 + $0x10] sm:$0xff]
        %v1821 = vld [vmem:[#allocation2 + $0x18] sm:$0xff]
        %v1822 = vld [vmem:[#allocation2 + $0x20] sm:$0xff]
        %v1823 = vld [vmem:[#allocation2 + $0x28] sm:$0xff]
        %v1824 = vld [vmem:[#allocation2 + $0x30] sm:$0xff]
        %v1825 = vld [vmem:[#allocation2 + $0x38] sm:$0xff]
        %v1826 = vld [vmem:[#allocation2 + $0x40] sm:$0xff]
        %v1827 = vld [vmem:[#allocation2 + $0x48] sm:$0xff]
        %v1828 = vld [vmem:[#allocation2 + $0x50] sm:$0xff]
        %v1829 = vld [vmem:[#allocation2 + $0x58] sm:$0xff]
        %v1830 = vld [vmem:[#allocation2 + $0x60] sm:$0xff]
        %v1831 = vld [vmem:[#allocation2 + $0x68] sm:$0xff]
        %v1832 = vld [vmem:[#allocation2 + $0x70] sm:$0xff]
        %v1833 = vld [vmem:[#allocation2 + $0x78] sm:$0xff]
        %v1834 = vld [vmem:[%s4] sm:$0xff]
        %v1835 = vld [vmem:[%s4 + $0x8] sm:$0xff]
        %v1836 = vld [vmem:[%s4 + $0x10] sm:$0xff]
        %v1837 = vld [vmem:[%s4 + $0x18] sm:$0xff]
        %v1838 = vld [vmem:[%s4 + $0x20] sm:$0xff]
        %v1839 = vld [vmem:[%s4 + $0x28] sm:$0xff]
        %v1840 = vld [vmem:[%s4 + $0x30] sm:$0xff]
        %v1841 = vld [vmem:[%s4 + $0x38] sm:$0xff]
        %v1842 = vld [vmem:[%s4 + $0x40] sm:$0xff]
        %v1843 = vld [vmem:[%s4 + $0x48] sm:$0xff]
        %v1844 = vld [vmem:[%s4 + $0x50] sm:$0xff]
        %v1845 = vld [vmem:[%s4 + $0x58] sm:$0xff]
        %v1846 = vld [vmem:[%s4 + $0x60] sm:$0xff]
        %v1847 = vld [vmem:[%s4 + $0x68] sm:$0xff]
        %v1848 = vld [vmem:[%s4 + $0x70] sm:$0xff]
        %v1849 = vld [vmem:[%s4 + $0x78] sm:$0xff]
        %v1850 = vld [vmem:[%s5] sm:$0x1]
        %v1852 = vperm.slane %v1850, 0
        %1854 = vmatpush.msra.mxu0 %v1849
        %1855 = vmatpush.msra.mxu0 %v1848
        %1856 = vmatpush.msra.mxu0 %v1847
        %1857 = vmatpush.msra.mxu0 %v1846
        %1858 = vmatpush.msra.mxu0 %v1845
        %1859 = vmatpush.msra.mxu0 %v1844
        %1860 = vmatpush.msra.mxu0 %v1843
        %1861 = vmatpush.msra.mxu0 %v1842
        %1862 = vmatpush.msra.mxu0 %v1841
        %1863 = vmatpush.msra.mxu0 %v1840
        %1864 = vmatpush.msra.mxu0 %v1839
        %1865 = vmatpush.msra.mxu0 %v1838
        %1866 = vmatpush.msra.mxu0 %v1837
        %1867 = vmatpush.msra.mxu0 %v1836
        %1868 = vmatpush.msra.mxu0 %v1835
        %1869 = vmatpush.msra.mxu0 %v1834
        %1870 = vmatmul.f32.gmra.mxu0 %v1818
        %v1871 = vpop.f32.mrf.mxu0
        %v1872 = vadd.f32 %v1852, %v1871
        %1873 = vmatmul.f32.gmra.mxu0 %v1819
        %v1874 = vpop.f32.mrf.mxu0
        %v1875 = vadd.f32 %v1852, %v1874
        %1876 = vmatmul.f32.gmra.mxu0 %v1820
        %v1877 = vpop.f32.mrf.mxu0
        %v1878 = vadd.f32 %v1852, %v1877
        %1879 = vmatmul.f32.gmra.mxu0 %v1821
        %v1880 = vpop.f32.mrf.mxu0
        %v1881 = vadd.f32 %v1852, %v1880
        %1882 = vmatmul.f32.gmra.mxu0 %v1822
        %v1883 = vpop.f32.mrf.mxu0
        %v1884 = vadd.f32 %v1852, %v1883
        %1885 = vmatmul.f32.gmra.mxu0 %v1823
        %v1886 = vpop.f32.mrf.mxu0
        %v1887 = vadd.f32 %v1852, %v1886
        %1888 = vmatmul.f32.gmra.mxu0 %v1824
        %v1889 = vpop.f32.mrf.mxu0
        %v1890 = vadd.f32 %v1852, %v1889
        %1891 = vmatmul.f32.gmra.mxu0 %v1825
        %v1892 = vpop.f32.mrf.mxu0
        %v1893 = vadd.f32 %v1852, %v1892
        %1894 = vmatmul.f32.gmra.mxu0 %v1826
        %v1895 = vpop.f32.mrf.mxu0
        %v1896 = vadd.f32 %v1852, %v1895
        %1897 = vmatmul.f32.gmra.mxu0 %v1827
        %v1898 = vpop.f32.mrf.mxu0
        %v1899 = vadd.f32 %v1852, %v1898
        %1900 = vmatmul.f32.gmra.mxu0 %v1828
        %v1901 = vpop.f32.mrf.mxu0
        %v1902 = vadd.f32 %v1852, %v1901
        %1903 = vmatmul.f32.gmra.mxu0 %v1829
        %v1904 = vpop.f32.mrf.mxu0
        %v1905 = vadd.f32 %v1852, %v1904
        %1906 = vmatmul.f32.gmra.mxu0 %v1830
        %v1907 = vpop.f32.mrf.mxu0
        %v1908 = vadd.f32 %v1852, %v1907
        %1909 = vmatmul.f32.gmra.mxu0 %v1831
        %v1910 = vpop.f32.mrf.mxu0
        %v1911 = vadd.f32 %v1852, %v1910
        %1912 = vmatmul.f32.gmra.mxu0 %v1832
        %v1913 = vpop.f32.mrf.mxu0
        %v1914 = vadd.f32 %v1852, %v1913
        %1915 = vmatmul.f32.gmra.mxu0 %v1833
        %v1916 = vpop.f32.mrf.mxu0
        %v1917 = vadd.f32 %v1852, %v1916
        %1918 = vdwg.mxu0
        %vm1919 = vcmask 64512
        %1920 = vst.msk [vmem:[%s352] sm:$0xff] %vm1919, %v1872
        %1921 = vst.msk [vmem:[%s352 + $0x8] sm:$0xff] %vm1919, %v1875
        %1922 = vst.msk [vmem:[%s352 + $0x10] sm:$0xff] %vm1919, %v1878
        %1923 = vst.msk [vmem:[%s352 + $0x18] sm:$0xff] %vm1919, %v1881
        %1924 = vst.msk [vmem:[%s352 + $0x20] sm:$0xff] %vm1919, %v1884
        %1925 = vst.msk [vmem:[%s352 + $0x28] sm:$0xff] %vm1919, %v1887
        %1926 = vst.msk [vmem:[%s352 + $0x30] sm:$0xff] %vm1919, %v1890
        %1927 = vst.msk [vmem:[%s352 + $0x38] sm:$0xff] %vm1919, %v1893
        %1928 = vst.msk [vmem:[%s352 + $0x40] sm:$0xff] %vm1919, %v1896
        %1929 = vst.msk [vmem:[%s352 + $0x48] sm:$0xff] %vm1919, %v1899
        %1930 = vst.msk [vmem:[%s352 + $0x50] sm:$0xff] %vm1919, %v1902
        %1931 = vst.msk [vmem:[%s352 + $0x58] sm:$0xff] %vm1919, %v1905
        %1932 = vst.msk [vmem:[%s352 + $0x60] sm:$0xff] %vm1919, %v1908
        %1933 = vst.msk [vmem:[%s352 + $0x68] sm:$0xff] %vm1919, %v1911
        %1934 = vst.msk [vmem:[%s352 + $0x70] sm:$0xff] %vm1919, %v1914
        %1935 = vst.msk [vmem:[%s352 + $0x78] sm:$0xff] %vm1919, %v1917
        %s1936 = smul.u32 8, %s25
        %s1937 = smul.u32 2, %s24
        %p1938 = scmp.lt.s32.totalorder %s1936, 15
        %s1939 = scalar_select %p1938, %s1936, 15
        %p1940 = scmp.lt.s32.totalorder %s1937, 1
        %s1941 = scalar_select %p1940, %s1937, 1
        %s1942 = smul.addr %s1939, 2
        %s1943 = sadd.s32 %s1941, %s1942
        %s1944 = smul.addr %s1943, 8
        %s1945 = scalar_lea.vmem %s6, %s1944
        // Predicated region
        $region49: #{gru_forward.1} parent=43 // pred_check
          %p1946 = pneg %p190
        $region50: #{gru_forward.1} parent=43 // pred_check_branch
          %1948 = sbr.rel (%p1946) target = $region52
        $region51: #{gru_forward.1} parent=43 // pred_region
          %s1949 = smul.u32 8, %s25
          %s1950 = smul.u32 2, %s24
        $region52: #{gru_forward.1} parent=43 // pred_fallthru
          _
        // Predicated region
        $region53: #{gru_forward.1} parent=43 // pred_check
          %p1951 = pneg %p216
        $region54: #{gru_forward.1} parent=43 // pred_check_branch
          %1953 = sbr.rel (%p1951) target = $region56
        $region55: #{gru_forward.1} parent=43 // pred_region
          %s1954 = smul.u32 2, %s24
          %1956 = vsyncadd [#allocation4], 0
          %s1957 = smul.addr %s1954, 8
          %s1958 = scalar_lea.hbm %s7, %s1957
          %s1959 = sshll.u32 [#allocation3], 4
          %s1960 = int_to_ptr.vmem [resolvable:$true] %s1959
          %s1961 = sshll.u32 %s1958, 4
          %s1962 = int_to_ptr.hbm [resolvable:$true] %s1961
          %1967 = dma.vmem_to_hbm [thread:$0]  %s1960, 256, %s1962, [#allocation4], 128, 128, 8
        $region56: #{gru_forward.1} parent=43 // pred_fallthru
          _
        // Predicated region
        $region57: #{gru_forward.1} parent=43 // pred_check
          %p1968 = pneg %p216
        $region58: #{gru_forward.1} parent=43 // pred_check_branch
          %1970 = sbr.rel (%p1968) target = $region60
        $region59: #{gru_forward.1} parent=43 // pred_region
          %1972 = dma.done [#allocation4], 256
        $region60: #{gru_forward.1} parent=43 // pred_fallthru
          _
      $region44: #{gru_forward.1} parent=5 // pred_fallthru
        _
      %p1973 = scmp.le.s32.totalorder 2, %s15
      // Predicated region
      $region61: #{gru_forward.1} parent=5 // pred_check
        %p1974 = pneg %p1973
      $region62: #{gru_forward.1} parent=5 // pred_check_branch
        %1976 = sbr.rel (%p1974) target = $region64
      $region63: #{gru_forward.1} parent=5 // pred_region
        %s1977 = ssub.s32 %s15, 2
        // Predicated region
        $region65: #{gru_forward.1} parent=63 // pred_check
          %p1978 = pneg %p196
        $region66: #{gru_forward.1} parent=63 // pred_check_branch
          %1980 = sbr.rel (%p1978) target = $region68
        $region67: #{gru_forward.1} parent=63 // pred_region
          %s1981 = smul.u32 8, %s27
          %s1982 = smul.u32 2, %s26
          %p1983 = scmp.lt.s32.totalorder %s1981, 15
          %s1984 = scalar_select %p1983, %s1981, 15
          %p1985 = scmp.lt.s32.totalorder %s1982, 1
          %s1986 = scalar_select %p1985, %s1982, 1
          %s1987 = smul.addr %s1984, 2
          %s1988 = sadd.s32 %s1986, %s1987
          %s1989 = smul.addr %s1988, 8
          %s1990 = scalar_lea.vmem %s6, %s1989
        $region68: #{gru_forward.1} parent=63 // pred_fallthru
          _
      $region64: #{gru_forward.1} parent=5 // pred_fallthru
        _
    $region6: #{gru_forward.1} parent=1 // loop_footer
      %s19 = sadd.s32 1, %s15
    $region7: #{gru_forward.1} parent=1 // loop_footer_branch
      %14 = sbr.rel target = $region3
    $region8: #{gru_forward.1} parent=1 // loop_exit
      _
    %1991 = vsyncpa [#allocation4], 1
    %s1992 = scalar_lea.sflag [#allocation4], 1
    %1993 = vsyncpa %s1992, 1

</llo_original>
